<compile_context>
chip_gen: v7x
topology: tpu7x:2x2x1
jax: 0.10.0
libtpu: 0.0.40
codegen_flags: <defaults>
</compile_context>

<pallas_src>
import inspect
import math

import jax
import jax.numpy as jnp
from jax.experimental import pallas as pl
from jax.experimental.pallas import tpu as pltpu


_NEG_BIG = -1e30  # bias for zero-padded vocab columns -> exp() underflows to 0


def _round_up(x, m):
    return ((x + m - 1) // m) * m


def _pad_axis(a, axis, new_size, value=0.0):
    if a.shape[axis] == new_size:
        return a
    pads = [(0, 0)] * a.ndim
    pads[axis] = (0, new_size - a.shape[axis])
    return jnp.pad(a, pads, constant_values=value)


def _derive_tile_m(m_rows, tile_m):
    """Row tile: multiple of 8, bounded zero-row padding, >=2 grid steps."""
    tm = max(8, min(tile_m, _round_up(m_rows, 8)))
    tm = (tm // 8) * 8
    # Bound all-zero padded rows to ~12.5% of the real rows.
    while tm > 8 and _round_up(m_rows, tm) * 8 > m_rows * 9:
        tm -= 8
    # v7x megacore: give both TensorCores at least one "parallel" row block.
    if _round_up(m_rows, tm) // tm < 2 and tm > 8:
        tm = max(8, _round_up(tm // 2, 8))
    return tm


def _vmem_limit_bytes():
    """~85% of physical VMEM (v5e/v6e: 128 MiB, v7x: 64 MiB per core)."""
    cap = 64 * 1024 * 1024
    try:
        cap = int(getattr(pltpu.get_tpu_info(), "vmem_capacity_bytes", cap))
    except Exception:  # hardware-info query unavailable -> conservative default
        pass
    return max(32 * 1024 * 1024, int(cap * 0.85))


def _supports_single_buffer():
    """Capability probe for pl.Buffered / BlockSpec(pipeline_mode=...)."""
    if not hasattr(pl, "Buffered"):
        return False
    try:
        return "pipeline_mode" in inspect.signature(pl.BlockSpec).parameters
    except (TypeError, ValueError):
        return True


def _ovis_kernel(patches_ref, conv_w_ref, conv_b_ref, wmean_ref, wcov_ref,
                 mlp_w_ref, ln_g_ref, ln_b_ref, emb_ref, out_ref,
                 y_bf, mean_s, rstd_s, m_s, l_s, acc_s):
    """Grid = (row tiles ["parallel"], vocab tiles ["arbitrary"])."""
    j = pl.program_id(1)

    @pl.when(j == 0)
    def _init():
        # Conv2d as an im2col matmul (+ bias); f32 accumulation on the MXU.
        y = jnp.dot(patches_ref[...], conv_w_ref[...],
                    preferred_element_type=jnp.float32) + conv_b_ref[...]
        # Closed-form LayerNorm statistics over the (virtual) vocab axis:
        #   mean_i = y_i . mean_v W[:, v]
        #   var_i  = y_i^T Cov_v(W) y_i     (exact identities; no pass over V)
        mean = jnp.sum(y * wmean_ref[...], axis=-1, keepdims=True)
        var = jnp.sum(
            jnp.dot(y, wcov_ref[...], preferred_element_type=jnp.float32) * y,
            axis=-1, keepdims=True)
        mean_s[...] = mean
        rstd_s[...] = jax.lax.rsqrt(jnp.maximum(var, 0.0) + 1e-5)
        y_bf[...] = y.astype(jnp.bfloat16)
        # Online-softmax running state.
        m_s[...] = jnp.full_like(m_s, -jnp.inf)
        l_s[...] = jnp.zeros_like(l_s)
        acc_s[...] = jnp.zeros_like(acc_s)

    # Streamed vocab chunk: logits -> LayerNorm -> online softmax -> @ emb.
    logits = jnp.dot(y_bf[...], mlp_w_ref[...],
                     preferred_element_type=jnp.float32)            # (TM, TV)
    normed = ((logits - mean_s[...]) * rstd_s[...]) * ln_g_ref[...] + ln_b_ref[...]

    m_new = jnp.maximum(m_s[...], jnp.max(normed, axis=-1, keepdims=True))
    rescale = jnp.exp(m_s[...] - m_new)
    p = jnp.exp(normed - m_new)                                     # unnormalized
    l_s[...] = l_s[...] * rescale + jnp.sum(p, axis=-1, keepdims=True)
    acc_s[...] = acc_s[...] * rescale + jnp.dot(
        p.astype(jnp.bfloat16), emb_ref[...],
        preferred_element_type=jnp.float32)
    m_s[...] = m_new

    @pl.when(j == pl.num_programs(1) - 1)
    def _finalize():
        inv = pl.reciprocal(l_s[...], approx=True)
        out_ref[...] = (acc_s[...] * inv).astype(out_ref.dtype)


def ovis_conv_adapter(x, params, *, tile_m=128, tile_v=512,
                      out_dtype=jnp.bfloat16):
    """x: (F, v, D) with v = s*s + 1. Returns (F, n, dim_out) in out_dtype."""
    conv_w, conv_b, mlp_w, ln_g, ln_b, emb_w = (
        params["conv_w"], params["conv_b"], params["mlp_w"],
        params["ln_g"], params["ln_b"], params["emb_w"],
    )
    f, v, d = x.shape
    s = int(math.sqrt(v - 1))
    vocab = mlp_w.shape[1]
    dim_out = emb_w.shape[1]
    s_out = (s + 2 * 1 - 3) // 2 + 1
    n = s_out * s_out
    k9 = 9 * d

    # --- glue: drop CLS, NHWC, im2col (bf16 to halve HBM traffic) ------------
    # TODO(synk): fold the 3x3/stride-2 patch extraction into the kernel (DMA
    # padded frames + 9 accumulated shifted matmuls) to avoid the HBM im2col.
    x_sp = x[:, 1:, :].astype(jnp.bfloat16).reshape(f, s, s, d)
    x_pad = jnp.pad(x_sp, ((0, 0), (1, 1), (1, 1), (0, 0)))        # padding=1
    hi = 2 * (s_out - 1) + 1
    slabs = [x_pad[:, kh:kh + hi:2, kw:kw + hi:2, :]
             for kh in range(3) for kw in range(3)]
    patches = jnp.concatenate(slabs, axis=-1).reshape(f * n, k9)   # (F*n, 9D)

    # --- row tiling -----------------------------------------------------------
    m_rows = f * n
    tm = _derive_tile_m(m_rows, tile_m)
    m_pad = _round_up(m_rows, tm)
    patches = _pad_axis(patches, 0, m_pad)

    # --- lane-dense / tile-aligned padding ------------------------------------
    d_p = _round_up(d, 128)
    dout_p = _round_up(dim_out, 128)
    tv = min(_round_up(tile_v, 128), _round_up(vocab, 128))
    v_pad = _round_up(vocab, tv)

    # Conv weight (C_out, C_in, 3, 3) -> (kh, kw, C_in, C_out) -> (9D, Dp).
    conv_w_mat = jnp.transpose(conv_w, (2, 3, 1, 0)).reshape(k9, d)
    conv_w_mat = _pad_axis(conv_w_mat, 1, d_p).astype(jnp.bfloat16)
    conv_b_2d = _pad_axis(conv_b.reshape(1, d), 1, d_p).astype(jnp.float32)

    # Precomputed mlp-weight statistics for closed-form LayerNorm (f32).
    w32 = mlp_w.astype(jnp.float32)
    wmean = jnp.mean(w32, axis=1)                                   # (D,)
    wcov = w32 @ w32.T / vocab - jnp.outer(wmean, wmean)            # (D, D)
    wmean_2d = _pad_axis(wmean.reshape(1, d), 1, d_p)
    wcov_p = _pad_axis(_pad_axis(wcov, 0, d_p), 1, d_p)

    mlp_w_p = _pad_axis(_pad_axis(mlp_w.astype(jnp.bfloat16), 0, d_p), 1, v_pad)
    ln_g_2d = _pad_axis(ln_g.reshape(1, vocab).astype(jnp.float32), 1, v_pad)
    # Padded vocab columns get gamma=0 and a huge negative bias so their
    # softmax weight underflows to exactly 0 inside the kernel.
    ln_b_2d = _pad_axis(ln_b.reshape(1, vocab).astype(jnp.float32), 1, v_pad,
                        value=_NEG_BIG)
    emb_p = _pad_axis(_pad_axis(emb_w.astype(jnp.bfloat16), 0, v_pad), 1, dout_p)

    grid = (m_pad // tm, v_pad // tv)

    cost = pl.CostEstimate(
        flops=2 * m_pad * (k9 * d_p + d_p * d_p + d_p * v_pad + v_pad * dout_p),
        transcendentals=m_pad * (v_pad + 2 * grid[1]),
        bytes_accessed=(patches.size * 2 + conv_w_mat.size * 2
                        + wcov_p.size * 4
                        + grid[0] * (mlp_w_p.size + emb_p.size) * 2
                        + m_pad * dout_p * jnp.dtype(out_dtype).itemsize),
    )

    def build(single_buffer_consts):
        def const_spec(shape):
            idx = lambda i, j: (0,) * len(shape)
            if single_buffer_consts:
                # Constant blocks are never re-fetched; one buffer halves their
                # VMEM footprint (matters for conv_w / wcov at real sizes).
                return pl.BlockSpec(shape, idx, pipeline_mode=pl.Buffered(1))
            return pl.BlockSpec(shape, idx)

        return pl.pallas_call(
            _ovis_kernel,
            out_shape=jax.ShapeDtypeStruct((m_pad, dout_p), out_dtype),
            grid_spec=pltpu.PrefetchScalarGridSpec(
                num_scalar_prefetch=0,
                grid=grid,
                in_specs=[
                    pl.BlockSpec((tm, k9), lambda i, j: (i, 0)),     # patches
                    const_spec((k9, d_p)),                           # conv_w
                    const_spec((1, d_p)),                            # conv_b
                    const_spec((1, d_p)),                            # wmean
                    const_spec((d_p, d_p)),                          # wcov
                    pl.BlockSpec((d_p, tv), lambda i, j: (0, j)),    # mlp_w chunk
                    pl.BlockSpec((1, tv), lambda i, j: (0, j)),      # ln gamma
                    pl.BlockSpec((1, tv), lambda i, j: (0, j)),      # ln beta
                    pl.BlockSpec((tv, dout_p), lambda i, j: (j, 0)), # emb chunk
                ],
                out_specs=pl.BlockSpec((tm, dout_p), lambda i, j: (i, 0)),
                scratch_shapes=[
                    pltpu.VMEM((tm, d_p), jnp.bfloat16),    # conv output y
                    pltpu.VMEM((tm, 1), jnp.float32),       # LN mean
                    pltpu.VMEM((tm, 1), jnp.float32),       # LN rstd
                    pltpu.VMEM((tm, 1), jnp.float32),       # running max
                    pltpu.VMEM((tm, 1), jnp.float32),       # running denom
                    pltpu.VMEM((tm, dout_p), jnp.float32),  # output accumulator
                ],
            ),
            compiler_params=pltpu.CompilerParams(
                dimension_semantics=("parallel", "arbitrary"),
                vmem_limit_bytes=_vmem_limit_bytes(),
            ),
            cost_estimate=cost,
        )

    args = (patches, conv_w_mat, conv_b_2d, wmean_2d, wcov_p,
            mlp_w_p, ln_g_2d, ln_b_2d, emb_p)
    if _supports_single_buffer():
        try:
            out = build(True)(*args)
        except (pltpu.LoweringException, NotImplementedError, ValueError,
                TypeError):
            # Narrow, typed retry: only when pl.Buffered(1) itself is not
            # lowerable on this jax/libtpu. Any genuine kernel error
            # re-surfaces from the plain (double-buffered) build below.
            out = build(False)(*args)
    else:
        out = build(False)(*args)

    return out[:m_rows, :dim_out].reshape(f, n, dim_out)


def init_params(key, dim_in, dim_out, vocab_size):
    k1, k2, k3, k4 = jax.random.split(key, 4)
    return {
        "conv_w": jax.random.normal(k1, (dim_in, dim_in, 3, 3), jnp.float32) * 0.05,
        "conv_b": jax.random.normal(k2, (dim_in,), jnp.float32) * 0.05,
        "mlp_w": jax.random.normal(k3, (dim_in, vocab_size), jnp.float32) * 0.05,
        "ln_g": jnp.ones((vocab_size,), jnp.float32),
        "ln_b": jnp.zeros((vocab_size,), jnp.float32),
        "emb_w": jax.random.normal(k4, (vocab_size, dim_out), jnp.float32) * 0.05,
    }


def reference_forward(x, params):
    """Pure-JAX f32 reference matching the PyTorch module (for validation)."""
    conv_w, conv_b, mlp_w, ln_g, ln_b, emb_w = (
        params["conv_w"], params["conv_b"], params["mlp_w"],
        params["ln_g"], params["ln_b"], params["emb_w"],
    )
    f, v, d = x.shape
    s = int(math.sqrt(v - 1))
    xs = x[:, 1:, :].reshape(f, s, s, d).transpose(0, 3, 1, 2)      # NCHW
    y = jax.lax.conv_general_dilated(
        xs, conv_w, window_strides=(2, 2), padding=((1, 1), (1, 1)),
        dimension_numbers=("NCHW", "OIHW", "NCHW"))
    y = y + conv_b[None, :, None, None]
    y = y.transpose(0, 2, 3, 1).reshape(f, -1, d)
    logits = y @ mlp_w
    mean = logits.mean(-1, keepdims=True)
    var = ((logits - mean) ** 2).mean(-1, keepdims=True)
    normed = (logits - mean) * jax.lax.rsqrt(var + 1e-5) * ln_g + ln_b
    tokens = jax.nn.softmax(normed, axis=-1)
    return tokens @ emb_w


if __name__ == "__main__":
    F, S, DIM_IN, DIM_OUT, VOCAB = 3, 8, 32, 48, 200
    NUM_TOK = S * S + 1                                  # CLS + patches

    key = jax.random.PRNGKey(0)
    kx, kp = jax.random.split(key)
    x = jax.random.normal(kx, (F, NUM_TOK, DIM_IN), jnp.float32)
    params = init_params(kp, DIM_IN, DIM_OUT, VOCAB)

    # Small tiles so the demo exercises a 2x2 grid (row tiles x vocab tiles),
    # row padding (48 rows -> 2 x 24), and vocab padding/masking (200 -> 256).
    out = ovis_conv_adapter(x, params, tile_m=32, tile_v=128)
    out = jax.block_until_ready(out)

    s_out = (S + 2 - 3) // 2 + 1
    assert out.shape == (F, s_out * s_out, DIM_OUT), out.shape
    assert out.dtype == jnp.bfloat16, out.dtype
    out_f32 = out.astype(jnp.float32)
    assert bool(jnp.all(jnp.isfinite(out_f32)))

    # Loose tolerance vs the f32 reference (kernel uses bf16 matmul operands,
    # bf16 output, and an approx reciprocal for the softmax denominator).
    ref = reference_forward(x, params)
    err = float(jnp.max(jnp.abs(out_f32 - ref)))
    scale = float(jnp.max(jnp.abs(ref)))
    assert err <= 0.08 * scale + 2e-3, (err, scale)
    print("KERNEL_OK")
</pallas_src>

<mosaic_0001>
module attributes {stable_mosaic.version = 11 : i64} {
  func.func @_ovis_kernel(%arg0: i32, %arg1: i32, %arg2: memref<24x288xbf16, #tpu.memory_space<vmem>>, %arg3: memref<288x128xbf16, #tpu.memory_space<vmem>>, %arg4: memref<1x128xf32, #tpu.memory_space<vmem>>, %arg5: memref<1x128xf32, #tpu.memory_space<vmem>>, %arg6: memref<128x128xf32, #tpu.memory_space<vmem>>, %arg7: memref<128x128xbf16, #tpu.memory_space<vmem>>, %arg8: memref<1x128xf32, #tpu.memory_space<vmem>>, %arg9: memref<1x128xf32, #tpu.memory_space<vmem>>, %arg10: memref<128x128xbf16, #tpu.memory_space<vmem>>, %arg11: memref<24x128xbf16, #tpu.memory_space<vmem>>, %arg12: memref<24x128xbf16, #tpu.memory_space<vmem>>, %arg13: memref<24x1xf32, #tpu.memory_space<vmem>>, %arg14: memref<24x1xf32, #tpu.memory_space<vmem>>, %arg15: memref<24x1xf32, #tpu.memory_space<vmem>>, %arg16: memref<24x1xf32, #tpu.memory_space<vmem>>, %arg17: memref<24x128xf32, #tpu.memory_space<vmem>>) attributes {dimension_semantics = [#tpu.dimension_semantics<parallel>, #tpu.dimension_semantics<arbitrary>], iteration_bounds = array<i64: 2, 2>, scalar_prefetch = 0 : i64, scratch_operands = 6 : i64, tpu.core_type = #tpu.core_type<tc>, window_params = [{transform_indices = @transform_0, window_bounds = array<i64: 24, 288>}, {pipeline_mode = #tpu.pipeline_mode<synchronous>, transform_indices = @transform_1, window_bounds = array<i64: 288, 128>}, {pipeline_mode = #tpu.pipeline_mode<synchronous>, transform_indices = @transform_2, window_bounds = array<i64: 1, 128>}, {pipeline_mode = #tpu.pipeline_mode<synchronous>, transform_indices = @transform_3, window_bounds = array<i64: 1, 128>}, {pipeline_mode = #tpu.pipeline_mode<synchronous>, transform_indices = @transform_4, window_bounds = array<i64: 128, 128>}, {transform_indices = @transform_5, window_bounds = array<i64: 128, 128>}, {transform_indices = @transform_6, window_bounds = array<i64: 1, 128>}, {transform_indices = @transform_7, window_bounds = array<i64: 1, 128>}, {transform_indices = @transform_8, window_bounds = array<i64: 128, 128>}, {transform_indices = @transform_9, window_bounds = array<i64: 24, 128>}]} {
    %c0_i32 = arith.constant 0 : i32
    %0 = arith.cmpi eq, %arg1, %c0_i32 : i32
    %1 = arith.extui %0 : i1 to i32
    %c0_i32_0 = arith.constant 0 : i32
    %2 = arith.cmpi ne, %1, %c0_i32_0 : i32
    scf.if %2 {
      %c0_32 = arith.constant 0 : index
      %c0_33 = arith.constant 0 : index
      %46 = vector.load %arg2[%c0_32, %c0_33] : memref<24x288xbf16, #tpu.memory_space<vmem>>, vector<24x288xbf16>
      %c0_34 = arith.constant 0 : index
      %c0_35 = arith.constant 0 : index
      %47 = vector.load %arg3[%c0_34, %c0_35] : memref<288x128xbf16, #tpu.memory_space<vmem>>, vector<288x128xbf16>
      %cst_36 = arith.constant dense<0.000000e+00> : vector<24x128xf32>
      %48 = tpu.matmul %46, %47, %cst_36 {dimension_numbers = #tpu.dot_dimension_numbers<[1], [0], [0], [1], [0, 0, 1, 1], [], []>} : vector<24x288xbf16>, vector<288x128xbf16>, vector<24x128xf32> -> vector<24x128xf32>
      %c0_37 = arith.constant 0 : index
      %c0_38 = arith.constant 0 : index
      %49 = vector.load %arg4[%c0_37, %c0_38] : memref<1x128xf32, #tpu.memory_space<vmem>>, vector<1x128xf32>
      %50 = vector.broadcast %49 : vector<1x128xf32> to vector<24x128xf32>
      %51 = arith.addf %48, %50 : vector<24x128xf32>
      %c0_39 = arith.constant 0 : index
      %c0_40 = arith.constant 0 : index
      %52 = vector.load %arg5[%c0_39, %c0_40] : memref<1x128xf32, #tpu.memory_space<vmem>>, vector<1x128xf32>
      %53 = vector.broadcast %52 : vector<1x128xf32> to vector<24x128xf32>
      %54 = arith.mulf %51, %53 : vector<24x128xf32>
      %cst_41 = arith.constant dense<0.000000e+00> : vector<24xf32>
      %55 = vector.multi_reduction <add>, %54, %cst_41 [1] : vector<24x128xf32> to vector<24xf32>
      %56 = vector.shape_cast %55 : vector<24xf32> to vector<24x1xf32>
      %c0_42 = arith.constant 0 : index
      %c0_43 = arith.constant 0 : index
      %57 = vector.load %arg6[%c0_42, %c0_43] : memref<128x128xf32, #tpu.memory_space<vmem>>, vector<128x128xf32>
      %cst_44 = arith.constant dense<0.000000e+00> : vector<24x128xf32>
      %58 = tpu.matmul %51, %57, %cst_44 {dimension_numbers = #tpu.dot_dimension_numbers<[1], [0], [0], [1], [0, 0, 1, 1], [], []>} : vector<24x128xf32>, vector<128x128xf32>, vector<24x128xf32> -> vector<24x128xf32>
      %59 = arith.mulf %58, %51 : vector<24x128xf32>
      %cst_45 = arith.constant dense<0.000000e+00> : vector<24xf32>
      %60 = vector.multi_reduction <add>, %59, %cst_45 [1] : vector<24x128xf32> to vector<24xf32>
      %61 = vector.shape_cast %60 : vector<24xf32> to vector<24x1xf32>
      %c0_46 = arith.constant 0 : index
      %c0_47 = arith.constant 0 : index
      %62 = vector.load %arg13[%c0_46, %c0_47] : memref<24x1xf32, #tpu.memory_space<vmem>>, vector<24x1xf32>
      tpu.vector_store %arg13[%c0_46, %c0_47], %56 {strides = array<i32>} : memref<24x1xf32, #tpu.memory_space<vmem>>, vector<24x1xf32>,
      %cst_48 = arith.constant 0.000000e+00 : f32
      %63 = vector.broadcast %cst_48 : f32 to vector<24x1xf32>
      %64 = arith.maximumf %61, %63 : vector<24x1xf32>
      %cst_49 = arith.constant 9.99999974E-6 : f32
      %65 = vector.broadcast %cst_49 : f32 to vector<24x1xf32>
      %66 = arith.addf %64, %65 : vector<24x1xf32>
      %67 = math.rsqrt %66 : vector<24x1xf32>
      %c0_50 = arith.constant 0 : index
      %c0_51 = arith.constant 0 : index
      %68 = vector.load %arg14[%c0_50, %c0_51] : memref<24x1xf32, #tpu.memory_space<vmem>>, vector<24x1xf32>
      tpu.vector_store %arg14[%c0_50, %c0_51], %67 {strides = array<i32>} : memref<24x1xf32, #tpu.memory_space<vmem>>, vector<24x1xf32>,
      %69 = arith.truncf %51 : vector<24x128xf32> to vector<24x128xbf16>
      %c0_52 = arith.constant 0 : index
      %c0_53 = arith.constant 0 : index
      %70 = vector.load %arg12[%c0_52, %c0_53] : memref<24x128xbf16, #tpu.memory_space<vmem>>, vector<24x128xbf16>
      tpu.vector_store %arg12[%c0_52, %c0_53], %69 {strides = array<i32>} : memref<24x128xbf16, #tpu.memory_space<vmem>>, vector<24x128xbf16>,
      %cst_54 = arith.constant 0xFF800000 : f32
      %71 = vector.broadcast %cst_54 : f32 to vector<24x1xf32>
      %c0_55 = arith.constant 0 : index
      %c0_56 = arith.constant 0 : index
      %72 = vector.load %arg15[%c0_55, %c0_56] : memref<24x1xf32, #tpu.memory_space<vmem>>, vector<24x1xf32>
      tpu.vector_store %arg15[%c0_55, %c0_56], %71 {strides = array<i32>} : memref<24x1xf32, #tpu.memory_space<vmem>>, vector<24x1xf32>,
      %cst_57 = arith.constant 0.000000e+00 : f32
      %73 = vector.broadcast %cst_57 : f32 to vector<24x1xf32>
      %c0_58 = arith.constant 0 : index
      %c0_59 = arith.constant 0 : index
      %74 = vector.load %arg16[%c0_58, %c0_59] : memref<24x1xf32, #tpu.memory_space<vmem>>, vector<24x1xf32>
      tpu.vector_store %arg16[%c0_58, %c0_59], %73 {strides = array<i32>} : memref<24x1xf32, #tpu.memory_space<vmem>>, vector<24x1xf32>,
      %cst_60 = arith.constant 0.000000e+00 : f32
      %75 = vector.broadcast %cst_60 : f32 to vector<24x128xf32>
      %c0_61 = arith.constant 0 : index
      %c0_62 = arith.constant 0 : index
      %76 = vector.load %arg17[%c0_61, %c0_62] : memref<24x128xf32, #tpu.memory_space<vmem>>, vector<24x128xf32>
      tpu.vector_store %arg17[%c0_61, %c0_62], %75 {strides = array<i32>} : memref<24x128xf32, #tpu.memory_space<vmem>>, vector<24x128xf32>,
    } else {
    }
    %c0 = arith.constant 0 : index
    %c0_1 = arith.constant 0 : index
    %3 = vector.load %arg12[%c0, %c0_1] : memref<24x128xbf16, #tpu.memory_space<vmem>>, vector<24x128xbf16>
    %c0_2 = arith.constant 0 : index
    %c0_3 = arith.constant 0 : index
    %4 = vector.load %arg7[%c0_2, %c0_3] : memref<128x128xbf16, #tpu.memory_space<vmem>>, vector<128x128xbf16>
    %cst = arith.constant dense<0.000000e+00> : vector<24x128xf32>
    %5 = tpu.matmul %3, %4, %cst {dimension_numbers = #tpu.dot_dimension_numbers<[1], [0], [0], [1], [0, 0, 1, 1], [], []>} : vector<24x128xbf16>, vector<128x128xbf16>, vector<24x128xf32> -> vector<24x128xf32>
    %c0_4 = arith.constant 0 : index
    %c0_5 = arith.constant 0 : index
    %6 = vector.load %arg13[%c0_4, %c0_5] : memref<24x1xf32, #tpu.memory_space<vmem>>, vector<24x1xf32>
    %7 = vector.broadcast %6 : vector<24x1xf32> to vector<24x128xf32>
    %8 = arith.subf %5, %7 : vector<24x128xf32>
    %c0_6 = arith.constant 0 : index
    %c0_7 = arith.constant 0 : index
    %9 = vector.load %arg14[%c0_6, %c0_7] : memref<24x1xf32, #tpu.memory_space<vmem>>, vector<24x1xf32>
    %10 = vector.broadcast %9 : vector<24x1xf32> to vector<24x128xf32>
    %11 = arith.mulf %8, %10 : vector<24x128xf32>
    %c0_8 = arith.constant 0 : index
    %c0_9 = arith.constant 0 : index
    %12 = vector.load %arg8[%c0_8, %c0_9] : memref<1x128xf32, #tpu.memory_space<vmem>>, vector<1x128xf32>
    %13 = vector.broadcast %12 : vector<1x128xf32> to vector<24x128xf32>
    %14 = arith.mulf %11, %13 : vector<24x128xf32>
    %c0_10 = arith.constant 0 : index
    %c0_11 = arith.constant 0 : index
    %15 = vector.load %arg9[%c0_10, %c0_11] : memref<1x128xf32, #tpu.memory_space<vmem>>, vector<1x128xf32>
    %16 = vector.broadcast %15 : vector<1x128xf32> to vector<24x128xf32>
    %17 = arith.addf %14, %16 : vector<24x128xf32>
    %c0_12 = arith.constant 0 : index
    %c0_13 = arith.constant 0 : index
    %18 = vector.load %arg15[%c0_12, %c0_13] : memref<24x1xf32, #tpu.memory_space<vmem>>, vector<24x1xf32>
    %cst_14 = arith.constant dense<0xFF800000> : vector<24xf32>
    %19 = vector.multi_reduction <maximumf>, %17, %cst_14 [1] : vector<24x128xf32> to vector<24xf32>
    %20 = vector.shape_cast %19 : vector<24xf32> to vector<24x1xf32>
    %21 = arith.maximumf %18, %20 : vector<24x1xf32>
    %c0_15 = arith.constant 0 : index
    %c0_16 = arith.constant 0 : index
    %22 = vector.load %arg15[%c0_15, %c0_16] : memref<24x1xf32, #tpu.memory_space<vmem>>, vector<24x1xf32>
    %23 = arith.subf %22, %21 : vector<24x1xf32>
    %24 = math.exp %23 : vector<24x1xf32>
    %25 = vector.broadcast %21 : vector<24x1xf32> to vector<24x128xf32>
    %26 = arith.subf %17, %25 : vector<24x128xf32>
    %27 = math.exp %26 : vector<24x128xf32>
    %c0_17 = arith.constant 0 : index
    %c0_18 = arith.constant 0 : index
    %28 = vector.load %arg16[%c0_17, %c0_18] : memref<24x1xf32, #tpu.memory_space<vmem>>, vector<24x1xf32>
    %29 = arith.mulf %28, %24 : vector<24x1xf32>
    %cst_19 = arith.constant dense<0.000000e+00> : vector<24xf32>
    %30 = vector.multi_reduction <add>, %27, %cst_19 [1] : vector<24x128xf32> to vector<24xf32>
    %31 = vector.shape_cast %30 : vector<24xf32> to vector<24x1xf32>
    %32 = arith.addf %29, %31 : vector<24x1xf32>
    %c0_20 = arith.constant 0 : index
    %c0_21 = arith.constant 0 : index
    %33 = vector.load %arg16[%c0_20, %c0_21] : memref<24x1xf32, #tpu.memory_space<vmem>>, vector<24x1xf32>
    tpu.vector_store %arg16[%c0_20, %c0_21], %32 {strides = array<i32>} : memref<24x1xf32, #tpu.memory_space<vmem>>, vector<24x1xf32>,
    %c0_22 = arith.constant 0 : index
    %c0_23 = arith.constant 0 : index
    %34 = vector.load %arg17[%c0_22, %c0_23] : memref<24x128xf32, #tpu.memory_space<vmem>>, vector<24x128xf32>
    %35 = vector.broadcast %24 : vector<24x1xf32> to vector<24x128xf32>
    %36 = arith.mulf %34, %35 : vector<24x128xf32>
    %37 = arith.truncf %27 : vector<24x128xf32> to vector<24x128xbf16>
    %c0_24 = arith.constant 0 : index
    %c0_25 = arith.constant 0 : index
    %38 = vector.load %arg10[%c0_24, %c0_25] : memref<128x128xbf16, #tpu.memory_space<vmem>>, vector<128x128xbf16>
    %cst_26 = arith.constant dense<0.000000e+00> : vector<24x128xf32>
    %39 = tpu.matmul %37, %38, %cst_26 {dimension_numbers = #tpu.dot_dimension_numbers<[1], [0], [0], [1], [0, 0, 1, 1], [], []>} : vector<24x128xbf16>, vector<128x128xbf16>, vector<24x128xf32> -> vector<24x128xf32>
    %40 = arith.addf %36, %39 : vector<24x128xf32>
    %c0_27 = arith.constant 0 : index
    %c0_28 = arith.constant 0 : index
    %41 = vector.load %arg17[%c0_27, %c0_28] : memref<24x128xf32, #tpu.memory_space<vmem>>, vector<24x128xf32>
    tpu.vector_store %arg17[%c0_27, %c0_28], %40 {strides = array<i32>} : memref<24x128xf32, #tpu.memory_space<vmem>>, vector<24x128xf32>,
    %c0_29 = arith.constant 0 : index
    %c0_30 = arith.constant 0 : index
    %42 = vector.load %arg15[%c0_29, %c0_30] : memref<24x1xf32, #tpu.memory_space<vmem>>, vector<24x1xf32>
    tpu.vector_store %arg15[%c0_29, %c0_30], %21 {strides = array<i32>} : memref<24x1xf32, #tpu.memory_space<vmem>>, vector<24x1xf32>,
    %c1_i32 = arith.constant 1 : i32
    %43 = arith.cmpi eq, %arg1, %c1_i32 : i32
    %44 = arith.extui %43 : i1 to i32
    %c0_i32_31 = arith.constant 0 : i32
    %45 = arith.cmpi ne, %44, %c0_i32_31 : i32
    scf.if %45 {
      %c0_32 = arith.constant 0 : index
      %c0_33 = arith.constant 0 : index
      %46 = vector.load %arg16[%c0_32, %c0_33] : memref<24x1xf32, #tpu.memory_space<vmem>>, vector<24x1xf32>
      %47 = tpu.reciprocal %46 {approx = true} : vector<24x1xf32> -> vector<24x1xf32>
      %c0_34 = arith.constant 0 : index
      %c0_35 = arith.constant 0 : index
      %48 = vector.load %arg17[%c0_34, %c0_35] : memref<24x128xf32, #tpu.memory_space<vmem>>, vector<24x128xf32>
      %49 = vector.broadcast %47 : vector<24x1xf32> to vector<24x128xf32>
      %50 = arith.mulf %48, %49 : vector<24x128xf32>
      %51 = arith.truncf %50 : vector<24x128xf32> to vector<24x128xbf16>
      %c0_36 = arith.constant 0 : index
      %c0_37 = arith.constant 0 : index
      %52 = vector.load %arg11[%c0_36, %c0_37] : memref<24x128xbf16, #tpu.memory_space<vmem>>, vector<24x128xbf16>
      tpu.vector_store %arg11[%c0_36, %c0_37], %51 {strides = array<i32>} : memref<24x128xbf16, #tpu.memory_space<vmem>>, vector<24x128xbf16>,
    } else {
    }
    return
  }
  func.func @transform_0(%arg0: i32, %arg1: i32) -> (i32, i32) {
    %c0_i32 = arith.constant 0 : i32
    %c0_i32_0 = arith.constant 0 : i32
    return %arg0, %c0_i32 : i32, i32
  }
  func.func @transform_1(%arg0: i32, %arg1: i32) -> (i32, i32) {
    %c0_i32 = arith.constant 0 : i32
    %c0_i32_0 = arith.constant 0 : i32
    %c0_i32_1 = arith.constant 0 : i32
    return %c0_i32, %c0_i32_0 : i32, i32
  }
  func.func @transform_2(%arg0: i32, %arg1: i32) -> (i32, i32) {
    %c0_i32 = arith.constant 0 : i32
    %c0_i32_0 = arith.constant 0 : i32
    %c0_i32_1 = arith.constant 0 : i32
    return %c0_i32, %c0_i32_0 : i32, i32
  }
  func.func @transform_3(%arg0: i32, %arg1: i32) -> (i32, i32) {
    %c0_i32 = arith.constant 0 : i32
    %c0_i32_0 = arith.constant 0 : i32
    %c0_i32_1 = arith.constant 0 : i32
    return %c0_i32, %c0_i32_0 : i32, i32
  }
  func.func @transform_4(%arg0: i32, %arg1: i32) -> (i32, i32) {
    %c0_i32 = arith.constant 0 : i32
    %c0_i32_0 = arith.constant 0 : i32
    %c0_i32_1 = arith.constant 0 : i32
    return %c0_i32, %c0_i32_0 : i32, i32
  }
  func.func @transform_5(%arg0: i32, %arg1: i32) -> (i32, i32) {
    %c0_i32 = arith.constant 0 : i32
    %c0_i32_0 = arith.constant 0 : i32
    return %c0_i32, %arg1 : i32, i32
  }
  func.func @transform_6(%arg0: i32, %arg1: i32) -> (i32, i32) {
    %c0_i32 = arith.constant 0 : i32
    %c0_i32_0 = arith.constant 0 : i32
    return %c0_i32, %arg1 : i32, i32
  }
  func.func @transform_7(%arg0: i32, %arg1: i32) -> (i32, i32) {
    %c0_i32 = arith.constant 0 : i32
    %c0_i32_0 = arith.constant 0 : i32
    return %c0_i32, %arg1 : i32, i32
  }
  func.func @transform_8(%arg0: i32, %arg1: i32) -> (i32, i32) {
    %c0_i32 = arith.constant 0 : i32
    %c0_i32_0 = arith.constant 0 : i32
    return %arg1, %c0_i32 : i32, i32
  }
  func.func @transform_9(%arg0: i32, %arg1: i32) -> (i32, i32) {
    %c0_i32 = arith.constant 0 : i32
    %c0_i32_0 = arith.constant 0 : i32
    return %arg0, %c0_i32 : i32, i32
  }
}

</mosaic_0001>

<llo_original>
// kernel: tpu_custom_call.1
$region0: #{tpu_custom_call.1}
  #allocation0 [shape = 'u32[]', space=smem, size = 0x4, offset = 0x4, fixed_abs, tag = 'smem constant byte address 0x4 - core index']
  #allocation1 [shape = 'u32[144,128]{1,0:T(1,128)}', space=vmem, size = 0x12000, scoped, tag = 'internal scratch']
  #allocation2 [shape = 'bf16[24,128]{1,0:T(8,128)(2,1)}', space=vmem, size = 0x1800, scoped, tag = 'scratch operand']
  #allocation3 [shape = 'f32[24,1]{1,0:T(8,128)}', space=vmem, size = 0x3000, scoped, tag = 'scratch operand']
  #allocation4 [shape = 'f32[24,1]{1,0:T(8,128)}', space=vmem, size = 0x3000, scoped, tag = 'scratch operand']
  #allocation5 [shape = 'f32[24,1]{1,0:T(8,128)}', space=vmem, size = 0x3000, scoped, tag = 'scratch operand']
  #allocation6 [shape = 'f32[24,1]{1,0:T(8,128)}', space=vmem, size = 0x3000, scoped, tag = 'scratch operand']
  #allocation7 [shape = 'f32[24,128]{1,0:T(8,128)}', space=vmem, size = 0x3000, scoped, tag = 'scratch operand']
  %s0 = inlined_call_operand.hbm [shape: bf16[48,288], index: 0, kind: input, shape index: {}]
  %s1 = inlined_call_operand.hbm [shape: bf16[288,128], index: 1, kind: input, shape index: {}]
  %s2 = inlined_call_operand.vmem [shape: f32[1,128], index: 2, kind: input, shape index: {}]
  %s3 = inlined_call_operand.vmem [shape: f32[1,128], index: 3, kind: input, shape index: {}]
  %s4 = inlined_call_operand.hbm [shape: f32[128,128], index: 4, kind: input, shape index: {}]
  %s5 = inlined_call_operand.hbm [shape: bf16[128,256], index: 5, kind: input, shape index: {}]
  %s6 = inlined_call_operand.vmem [shape: f32[1,256], index: 6, kind: input, shape index: {}]
  %s7 = inlined_call_operand.vmem [shape: f32[1,256], index: 7, kind: input, shape index: {}]
  %s8 = inlined_call_operand.hbm [shape: bf16[256,128], index: 8, kind: input, shape index: {}]
  %s9 = inlined_call_operand.hbm [shape: bf16[48,128], index: 9, kind: output, shape index: {}]
  %s10 = sld [smem:[#allocation0]]
  $region97: #{tpu_custom_call.1} parent=0
    _
  %s12 = ssub.s32 1, %s10
  %s13 = scalar_select 0, %s12, %s10
  $region1: #{tpu_custom_call.1} parent=0
    #allocation8 [shape = 'u8[36864]{0}', space=vmem, size = 0x9000, scoped, tag = 'input window, operand 0']
    #allocation9 [shape = 's32[2]{0}', space=sflag, size = 0x8, scoped, tag = 'scoped memory for tpu_custom_call.1']
    #allocation10 [shape = 's32[2]{0}', space=sflag, size = 0x8, scoped, tag = 'scoped memory for tpu_custom_call.1']
    #allocation11 [shape = 'u8[73728]{0}', space=vmem, size = 0x12000, scoped, tag = 'input window, operand 1, single buffered']
    #allocation12 [shape = 's32[1]{0}', space=sflag, size = 0x4, scoped, tag = 'scoped memory for tpu_custom_call.1']
    #allocation13 [shape = 'u8[65536]{0}', space=vmem, size = 0x10000, scoped, tag = 'input window, operand 4, single buffered']
    #allocation14 [shape = 'u8[65536]{0}', space=vmem, size = 0x10000, scoped, tag = 'input window, operand 5']
    #allocation15 [shape = 's32[2]{0}', space=sflag, size = 0x8, scoped, tag = 'scoped memory for tpu_custom_call.1']
    #allocation16 [shape = 'u8[65536]{0}', space=vmem, size = 0x10000, scoped, tag = 'input window, operand 8']
    #allocation17 [shape = 'u8[12288]{0}', space=vmem, size = 0x3000, scoped, tag = 'output window, operand 0']
    %14 = vsyncpa [#allocation9], 0
    %s15 = scalar_lea.sflag [#allocation9], 1
    %16 = vsyncpa %s15, 0
    %17 = vsyncpa [#allocation12], 0
    %18 = vsyncpa [#allocation15], 0
    %s19 = scalar_lea.sflag [#allocation15], 1
    %20 = vsyncpa %s19, 0
    %21 = vsyncpa [#allocation10], 0
    %s22 = scalar_lea.sflag [#allocation10], 1
    %23 = vsyncpa %s22, 0
    loop: start=0, step=1, limit=6
    $region2: #{tpu_custom_call.1} parent=1 // loop_pre_header
      _
    $region3: #{tpu_custom_call.1} parent=1 // loop_header
      %s25 = sphi 0, %s29
      %p26 = scmp.ge.s32.totalorder %s25, 6
      %s32 = sphi 0, %s44
      %s33 = sphi 0, %s40
      %s34 = sphi 0, %s32
      %s35 = sphi 0, %s33
      %s36 = sphi 0, %s34
      %s37 = sphi 0, %s35
      %s47 = sphi 0, %s49
      %s50 = sphi 0, %s47
      %s51 = sphi 0, %s50
      %s67 = sphi 0, %s51
      %s71 = sphi 0, %s71
      %s73 = sphi 0, %s71
      %s74 = sphi 0, %s73
      %s88 = sphi 0, %s74
      %s92 = sphi 0, %s92
      %s94 = sphi 0, %s92
      %s95 = sphi 0, %s94
      %s109 = sphi 0, %s95
      %s113 = sphi 0, %s113
      %s115 = sphi 0, %s113
      %s116 = sphi 0, %s115
      %s130 = sphi 0, %s116
      %s134 = sphi 0, %s134
      %s136 = sphi 0, %s134
      %s137 = sphi 0, %s136
      %s151 = sphi 0, %s137
      %s157 = sphi 0, %s159
      %s160 = sphi 0, %s157
      %s161 = sphi 0, %s160
      %s177 = sphi 0, %s161
      %s183 = sphi 0, %s185
      %s186 = sphi 0, %s183
      %s187 = sphi 0, %s186
      %s203 = sphi 0, %s187
      %s209 = sphi 0, %s211
      %s212 = sphi 0, %s209
      %s213 = sphi 0, %s212
      %s229 = sphi 0, %s213
      %s235 = sphi 0, %s237
      %s238 = sphi 0, %s235
      %s239 = sphi 0, %s238
      %s255 = sphi 0, %s239
      %s261 = sphi 0, %s263
      %s264 = sphi 0, %s261
      %s265 = sphi 0, %s264
      %s281 = sphi 0, %s265
    $region4: #{tpu_custom_call.1} parent=1 // loop_header_branch
      %28 = sbr.rel (%p26) target = $region8
    $region5: #{tpu_custom_call.1} parent=1 // loop_body
      %s30 = ssub.s32 %s25, 1
      %s31 = ssub.s32 %s25, 2
      %s38 = sadd.s32 1, %s33
      %p39 = scmp.ge.s32.totalorder %s38, 2
      %s40 = scalar_select %p39, 0, %s38
      %s41 = sadd.s32 1, %s32
      %s42 = scalar_select %p39, %s41, %s32
      %p43 = scmp.ge.s32.totalorder %s42, 2
      %s44 = scalar_select %p43, 0, %s42
      %s45 = ssub.s32 %s32, %s44
      %p46 = scmp.eq.s32.totalorder %s45, 0
      %s48 = sadd.s32 %s47, 1
      %s49 = scalar_select %p46, %s47, %s48
      %p52 = pneg %p46
      %p53 = scmp.eq.s32.totalorder %s25, 3
      %p54 = por %p52, %p53
      %p55 = scmp.ne.s32.totalorder %s47, %s50
      %p56 = scmp.eq.s32.totalorder %s25, 0
      %p57 = por %p55, %p56
      %p58 = scmp.ne.s32.totalorder %s47, %s50
      %p59 = scmp.eq.s32.totalorder %s30, 3
      %p60 = por %p58, %p59
      %p61 = scmp.ne.s32.totalorder %s50, %s51
      %p62 = scmp.eq.s32.totalorder %s30, 0
      %p63 = por %p61, %p62
      %p64 = scmp.ne.s32.totalorder %s50, %s51
      %p65 = scmp.eq.s32.totalorder %s31, 3
      %p66 = por %p64, %p65
      %p68 = scmp.ne.s32.totalorder %s51, %s67
      %p69 = scmp.eq.s32.totalorder %s31, 0
      %p70 = por %p68, %p69
      %s72 = sadd.s32 %s71, 1
      %p75 = scmp.eq.s32.totalorder %s25, 3
      %p76 = scmp.ne.s32.totalorder %s71, %s73
      %p77 = scmp.eq.s32.totalorder %s25, 0
      %p78 = por %p76, %p77
      %p79 = scmp.ne.s32.totalorder %s71, %s73
      %p80 = scmp.eq.s32.totalorder %s30, 3
      %p81 = por %p79, %p80
      %p82 = scmp.ne.s32.totalorder %s73, %s74
      %p83 = scmp.eq.s32.totalorder %s30, 0
      %p84 = por %p82, %p83
      %p85 = scmp.ne.s32.totalorder %s73, %s74
      %p86 = scmp.eq.s32.totalorder %s31, 3
      %p87 = por %p85, %p86
      %p89 = scmp.ne.s32.totalorder %s74, %s88
      %p90 = scmp.eq.s32.totalorder %s31, 0
      %p91 = por %p89, %p90
      %s93 = sadd.s32 %s92, 1
      %p96 = scmp.eq.s32.totalorder %s25, 3
      %p97 = scmp.ne.s32.totalorder %s92, %s94
      %p98 = scmp.eq.s32.totalorder %s25, 0
      %p99 = por %p97, %p98
      %p100 = scmp.ne.s32.totalorder %s92, %s94
      %p101 = scmp.eq.s32.totalorder %s30, 3
      %p102 = por %p100, %p101
      %p103 = scmp.ne.s32.totalorder %s94, %s95
      %p104 = scmp.eq.s32.totalorder %s30, 0
      %p105 = por %p103, %p104
      %p106 = scmp.ne.s32.totalorder %s94, %s95
      %p107 = scmp.eq.s32.totalorder %s31, 3
      %p108 = por %p106, %p107
      %p110 = scmp.ne.s32.totalorder %s95, %s109
      %p111 = scmp.eq.s32.totalorder %s31, 0
      %p112 = por %p110, %p111
      %s114 = sadd.s32 %s113, 1
      %p117 = scmp.eq.s32.totalorder %s25, 3
      %p118 = scmp.ne.s32.totalorder %s113, %s115
      %p119 = scmp.eq.s32.totalorder %s25, 0
      %p120 = por %p118, %p119
      %p121 = scmp.ne.s32.totalorder %s113, %s115
      %p122 = scmp.eq.s32.totalorder %s30, 3
      %p123 = por %p121, %p122
      %p124 = scmp.ne.s32.totalorder %s115, %s116
      %p125 = scmp.eq.s32.totalorder %s30, 0
      %p126 = por %p124, %p125
      %p127 = scmp.ne.s32.totalorder %s115, %s116
      %p128 = scmp.eq.s32.totalorder %s31, 3
      %p129 = por %p127, %p128
      %p131 = scmp.ne.s32.totalorder %s116, %s130
      %p132 = scmp.eq.s32.totalorder %s31, 0
      %p133 = por %p131, %p132
      %s135 = sadd.s32 %s134, 1
      %p138 = scmp.eq.s32.totalorder %s25, 3
      %p139 = scmp.ne.s32.totalorder %s134, %s136
      %p140 = scmp.eq.s32.totalorder %s25, 0
      %p141 = por %p139, %p140
      %p142 = scmp.ne.s32.totalorder %s134, %s136
      %p143 = scmp.eq.s32.totalorder %s30, 3
      %p144 = por %p142, %p143
      %p145 = scmp.ne.s32.totalorder %s136, %s137
      %p146 = scmp.eq.s32.totalorder %s30, 0
      %p147 = por %p145, %p146
      %p148 = scmp.ne.s32.totalorder %s136, %s137
      %p149 = scmp.eq.s32.totalorder %s31, 3
      %p150 = por %p148, %p149
      %p152 = scmp.ne.s32.totalorder %s137, %s151
      %p153 = scmp.eq.s32.totalorder %s31, 0
      %p154 = por %p152, %p153
      %s155 = ssub.s32 %s33, %s40
      %p156 = scmp.eq.s32.totalorder %s155, 0
      %s158 = sadd.s32 %s157, 1
      %s159 = scalar_select %p156, %s157, %s158
      %p162 = pneg %p156
      %p163 = scmp.eq.s32.totalorder %s25, 3
      %p164 = por %p162, %p163
      %p165 = scmp.ne.s32.totalorder %s157, %s160
      %p166 = scmp.eq.s32.totalorder %s25, 0
      %p167 = por %p165, %p166
      %p168 = scmp.ne.s32.totalorder %s157, %s160
      %p169 = scmp.eq.s32.totalorder %s30, 3
      %p170 = por %p168, %p169
      %p171 = scmp.ne.s32.totalorder %s160, %s161
      %p172 = scmp.eq.s32.totalorder %s30, 0
      %p173 = por %p171, %p172
      %p174 = scmp.ne.s32.totalorder %s160, %s161
      %p175 = scmp.eq.s32.totalorder %s31, 3
      %p176 = por %p174, %p175
      %p178 = scmp.ne.s32.totalorder %s161, %s177
      %p179 = scmp.eq.s32.totalorder %s31, 0
      %p180 = por %p178, %p179
      %s181 = ssub.s32 %s33, %s40
      %p182 = scmp.eq.s32.totalorder %s181, 0
      %s184 = sadd.s32 %s183, 1
      %s185 = scalar_select %p182, %s183, %s184
      %p188 = pneg %p182
      %p189 = scmp.eq.s32.totalorder %s25, 3
      %p190 = por %p188, %p189
      %p191 = scmp.ne.s32.totalorder %s183, %s186
      %p192 = scmp.eq.s32.totalorder %s25, 0
      %p193 = por %p191, %p192
      %p194 = scmp.ne.s32.totalorder %s183, %s186
      %p195 = scmp.eq.s32.totalorder %s30, 3
      %p196 = por %p194, %p195
      %p197 = scmp.ne.s32.totalorder %s186, %s187
      %p198 = scmp.eq.s32.totalorder %s30, 0
      %p199 = por %p197, %p198
      %p200 = scmp.ne.s32.totalorder %s186, %s187
      %p201 = scmp.eq.s32.totalorder %s31, 3
      %p202 = por %p200, %p201
      %p204 = scmp.ne.s32.totalorder %s187, %s203
      %p205 = scmp.eq.s32.totalorder %s31, 0
      %p206 = por %p204, %p205
      %s207 = ssub.s32 %s33, %s40
      %p208 = scmp.eq.s32.totalorder %s207, 0
      %s210 = sadd.s32 %s209, 1
      %s211 = scalar_select %p208, %s209, %s210
      %p214 = pneg %p208
      %p215 = scmp.eq.s32.totalorder %s25, 3
      %p216 = por %p214, %p215
      %p217 = scmp.ne.s32.totalorder %s209, %s212
      %p218 = scmp.eq.s32.totalorder %s25, 0
      %p219 = por %p217, %p218
      %p220 = scmp.ne.s32.totalorder %s209, %s212
      %p221 = scmp.eq.s32.totalorder %s30, 3
      %p222 = por %p220, %p221
      %p223 = scmp.ne.s32.totalorder %s212, %s213
      %p224 = scmp.eq.s32.totalorder %s30, 0
      %p225 = por %p223, %p224
      %p226 = scmp.ne.s32.totalorder %s212, %s213
      %p227 = scmp.eq.s32.totalorder %s31, 3
      %p228 = por %p226, %p227
      %p230 = scmp.ne.s32.totalorder %s213, %s229
      %p231 = scmp.eq.s32.totalorder %s31, 0
      %p232 = por %p230, %p231
      %s233 = ssub.s32 %s33, %s40
      %p234 = scmp.eq.s32.totalorder %s233, 0
      %s236 = sadd.s32 %s235, 1
      %s237 = scalar_select %p234, %s235, %s236
      %p240 = pneg %p234
      %p241 = scmp.eq.s32.totalorder %s25, 3
      %p242 = por %p240, %p241
      %p243 = scmp.ne.s32.totalorder %s235, %s238
      %p244 = scmp.eq.s32.totalorder %s25, 0
      %p245 = por %p243, %p244
      %p246 = scmp.ne.s32.totalorder %s235, %s238
      %p247 = scmp.eq.s32.totalorder %s30, 3
      %p248 = por %p246, %p247
      %p249 = scmp.ne.s32.totalorder %s238, %s239
      %p250 = scmp.eq.s32.totalorder %s30, 0
      %p251 = por %p249, %p250
      %p252 = scmp.ne.s32.totalorder %s238, %s239
      %p253 = scmp.eq.s32.totalorder %s31, 3
      %p254 = por %p252, %p253
      %p256 = scmp.ne.s32.totalorder %s239, %s255
      %p257 = scmp.eq.s32.totalorder %s31, 0
      %p258 = por %p256, %p257
      %s259 = ssub.s32 %s32, %s44
      %p260 = scmp.eq.s32.totalorder %s259, 0
      %s262 = sadd.s32 %s261, 1
      %s263 = scalar_select %p260, %s261, %s262
      %p266 = pneg %p260
      %p267 = scmp.eq.s32.totalorder %s25, 3
      %p268 = por %p266, %p267
      %p269 = scmp.ne.s32.totalorder %s261, %s264
      %p270 = scmp.eq.s32.totalorder %s25, 0
      %p271 = por %p269, %p270
      %p272 = scmp.ne.s32.totalorder %s261, %s264
      %p273 = scmp.eq.s32.totalorder %s30, 3
      %p274 = por %p272, %p273
      %p275 = scmp.ne.s32.totalorder %s264, %s265
      %p276 = scmp.eq.s32.totalorder %s30, 0
      %p277 = por %p275, %p276
      %p278 = scmp.ne.s32.totalorder %s264, %s265
      %p279 = scmp.eq.s32.totalorder %s31, 3
      %p280 = por %p278, %p279
      %p282 = scmp.ne.s32.totalorder %s265, %s281
      %p283 = scmp.eq.s32.totalorder %s31, 0
      %p284 = por %p282, %p283
      %p285 = scmp.le.s32.totalorder 1, %s25
      %p286 = scmp.lt.s32.totalorder %s25, 5
      %p287 = pnand %p285, %p286
      %p288 = pneg %p287
      // Predicated region
      $region9: #{tpu_custom_call.1} parent=5 // pred_check
        _
      $region10: #{tpu_custom_call.1} parent=5 // pred_check_branch
        %290 = sbr.rel (%p287) target = $region12
      $region11: #{tpu_custom_call.1} parent=5 // pred_region
        %s291 = ssub.s32 %s25, 1
        // Predicated region
        $region13: #{tpu_custom_call.1} parent=11 // pred_check
          %p292 = pneg %p84
        $region14: #{tpu_custom_call.1} parent=11 // pred_check_branch
          %294 = sbr.rel (%p292) target = $region16
        $region15: #{tpu_custom_call.1} parent=11 // pred_region
          %s296 = ssub.s32 2304, 2304
          %297 = vsyncadd [#allocation12], %s296
          %s298 = sshll.u32 [#allocation11], 4
          %s299 = int_to_ptr.vmem [resolvable:$true] %s298
          %304 = dma.hbm_to_vmem [thread:$0]  %s1, 2304, %s299, [#allocation12], 64, 64, 4
        $region16: #{tpu_custom_call.1} parent=11 // pred_fallthru
          _
        // Predicated region
        $region17: #{tpu_custom_call.1} parent=11 // pred_check
          %p305 = pneg %p105
        $region18: #{tpu_custom_call.1} parent=11 // pred_check_branch
          %307 = sbr.rel (%p305) target = $region20
        $region19: #{tpu_custom_call.1} parent=11 // pred_region
          _
        $region20: #{tpu_custom_call.1} parent=11 // pred_fallthru
          _
        // Predicated region
        $region21: #{tpu_custom_call.1} parent=11 // pred_check
          %p308 = pneg %p126
        $region22: #{tpu_custom_call.1} parent=11 // pred_check_branch
          %310 = sbr.rel (%p308) target = $region24
        $region23: #{tpu_custom_call.1} parent=11 // pred_region
          _
        $region24: #{tpu_custom_call.1} parent=11 // pred_fallthru
          _
        // Predicated region
        $region25: #{tpu_custom_call.1} parent=11 // pred_check
          %p311 = pneg %p147
        $region26: #{tpu_custom_call.1} parent=11 // pred_check_branch
          %313 = sbr.rel (%p311) target = $region28
        $region27: #{tpu_custom_call.1} parent=11 // pred_region
          %s315 = ssub.s32 2048, 2048
          %316 = vsyncadd [#allocation12], %s315
          %s317 = sshll.u32 [#allocation13], 4
          %s318 = int_to_ptr.vmem [resolvable:$true] %s317
          %323 = dma.hbm_to_vmem [thread:$0]  %s4, 2048, %s318, [#allocation12], 128, 128, 8
        $region28: #{tpu_custom_call.1} parent=11 // pred_fallthru
          _
      $region12: #{tpu_custom_call.1} parent=5 // pred_fallthru
        _
      %p324 = scmp.lt.s32.totalorder %s25, 4
      // Predicated region
      $region29: #{tpu_custom_call.1} parent=5 // pred_check
        %p325 = pneg %p324
      $region30: #{tpu_custom_call.1} parent=5 // pred_check_branch
        %327 = sbr.rel (%p325) target = $region32
      $region31: #{tpu_custom_call.1} parent=5 // pred_region
        // Predicated region
        $region33: #{tpu_custom_call.1} parent=31 // pred_check
          %p328 = pneg %p57
        $region34: #{tpu_custom_call.1} parent=31 // pred_check_branch
          %330 = sbr.rel (%p328) target = $region36
        $region35: #{tpu_custom_call.1} parent=31 // pred_region
          %s331 = sand.u32 %s47, 1
          %s332 = scalar_lea.sflag [#allocation9], %s331
          %s333 = sand.u32 %s47, 1
          %s334 = smul.addr %s333, 36
          %s335 = scalar_lea.vmem [#allocation8], %s334
          %s336 = smul.u32 3, %s32
          %s338 = ssub.s32 576, 576
          %339 = vsyncadd %s332, %s338
          %s340 = smul.addr %s336, 3
          %s341 = smul.addr %s340, 64
          %s342 = scalar_lea.hbm %s0, %s341
          %s343 = sshll.u32 %s335, 4
          %s344 = int_to_ptr.vmem [resolvable:$true] %s343
          %349 = dma.hbm_to_vmem [thread:$0]  %s342, 576, %s344, %s332, 192, 192, 12
        $region36: #{tpu_custom_call.1} parent=31 // pred_fallthru
          _
        // Predicated region
        $region37: #{tpu_custom_call.1} parent=31 // pred_check
          %p350 = pneg %p167
        $region38: #{tpu_custom_call.1} parent=31 // pred_check_branch
          %352 = sbr.rel (%p350) target = $region40
        $region39: #{tpu_custom_call.1} parent=31 // pred_region
          %s353 = sand.u32 %s25, 1
          %s354 = scalar_lea.sflag [#allocation15], %s353
          %s355 = sand.u32 %s157, 1
          %s356 = smul.addr %s355, 64
          %s357 = scalar_lea.vmem [#allocation14], %s356
          %s359 = ssub.s32 1024, 1024
          %360 = vsyncadd %s354, %s359
          %s361 = smul.addr %s33, 64
          %s362 = scalar_lea.hbm %s5, %s361
          %s363 = sshll.u32 %s357, 4
          %s364 = int_to_ptr.vmem [resolvable:$true] %s363
          %369 = dma.hbm_to_vmem [thread:$0]  %s362, 1024, %s364, %s354, 128, 64, 4
        $region40: #{tpu_custom_call.1} parent=31 // pred_fallthru
          _
        // Predicated region
        $region41: #{tpu_custom_call.1} parent=31 // pred_check
          %p370 = pneg %p193
        $region42: #{tpu_custom_call.1} parent=31 // pred_check_branch
          %372 = sbr.rel (%p370) target = $region44
        $region43: #{tpu_custom_call.1} parent=31 // pred_region
          %p373 = scmp.lt.s32.totalorder %s33, 1
          %s374 = scalar_select %p373, %s33, 1
          %s375 = scalar_lea.vmem %s6, %s374
        $region44: #{tpu_custom_call.1} parent=31 // pred_fallthru
          _
        // Predicated region
        $region45: #{tpu_custom_call.1} parent=31 // pred_check
          %p376 = pneg %p219
        $region46: #{tpu_custom_call.1} parent=31 // pred_check_branch
          %378 = sbr.rel (%p376) target = $region48
        $region47: #{tpu_custom_call.1} parent=31 // pred_region
          %p379 = scmp.lt.s32.totalorder %s33, 1
          %s380 = scalar_select %p379, %s33, 1
          %s381 = scalar_lea.vmem %s7, %s380
        $region48: #{tpu_custom_call.1} parent=31 // pred_fallthru
          _
        // Predicated region
        $region49: #{tpu_custom_call.1} parent=31 // pred_check
          %p382 = pneg %p245
        $region50: #{tpu_custom_call.1} parent=31 // pred_check_branch
          %384 = sbr.rel (%p382) target = $region52
        $region51: #{tpu_custom_call.1} parent=31 // pred_region
          %s385 = sand.u32 %s25, 1
          %s386 = scalar_lea.sflag [#allocation15], %s385
          %s387 = sand.u32 %s235, 1
          %s388 = smul.addr %s387, 64
          %s389 = scalar_lea.vmem [#allocation16], %s388
          %s390 = smul.u32 16, %s33
          %s392 = ssub.s32 1024, 1024
          %393 = vsyncadd %s386, %s392
          %s394 = smul.addr %s390, 64
          %s395 = scalar_lea.hbm %s8, %s394
          %s396 = sshll.u32 %s389, 4
          %s397 = int_to_ptr.vmem [resolvable:$true] %s396
          %402 = dma.hbm_to_vmem [thread:$0]  %s395, 1024, %s397, %s386, 64, 64, 4
        $region52: #{tpu_custom_call.1} parent=31 // pred_fallthru
          _
      $region32: #{tpu_custom_call.1} parent=5 // pred_fallthru
        _
      %p403 = scmp.le.s32.totalorder 1, %s25
      %p404 = scmp.lt.s32.totalorder %s25, 5
      %p405 = pnand %p403, %p404
      %p406 = pneg %p405
      // Predicated region
      $region53: #{tpu_custom_call.1} parent=5 // pred_check
        _
      $region54: #{tpu_custom_call.1} parent=5 // pred_check_branch
        %408 = sbr.rel (%p405) target = $region56
      $region55: #{tpu_custom_call.1} parent=5 // pred_region
        %s409 = ssub.s32 %s25, 1
        %s410 = sand.u32 %s50, 1
        %s411 = scalar_lea.sflag [#allocation9], %s410
        %s412 = sand.u32 %s50, 1
        %s413 = smul.addr %s412, 36
        %s414 = scalar_lea.vmem [#allocation8], %s413
        // Predicated region
        $region57: #{tpu_custom_call.1} parent=55 // pred_check
          %p415 = pneg %p63
        $region58: #{tpu_custom_call.1} parent=55 // pred_check_branch
          %417 = sbr.rel (%p415) target = $region60
        $region59: #{tpu_custom_call.1} parent=55 // pred_region
          %418 = dma.done %s411, 576
        $region60: #{tpu_custom_call.1} parent=55 // pred_fallthru
          _
        // Predicated region
        $region61: #{tpu_custom_call.1} parent=55 // pred_check
          %p419 = pneg %p84
        $region62: #{tpu_custom_call.1} parent=55 // pred_check_branch
          %421 = sbr.rel (%p419) target = $region64
        $region63: #{tpu_custom_call.1} parent=55 // pred_region
          %422 = dma.done [#allocation12], 2304
        $region64: #{tpu_custom_call.1} parent=55 // pred_fallthru
          _
        // Predicated region
        $region65: #{tpu_custom_call.1} parent=55 // pred_check
          %p423 = pneg %p147
        $region66: #{tpu_custom_call.1} parent=55 // pred_check_branch
          %425 = sbr.rel (%p423) target = $region68
        $region67: #{tpu_custom_call.1} parent=55 // pred_region
          %426 = dma.done [#allocation12], 2048
        $region68: #{tpu_custom_call.1} parent=55 // pred_fallthru
          _
        %s427 = sand.u32 %s30, 1
        %s428 = scalar_lea.sflag [#allocation15], %s427
        %s429 = sand.u32 %s160, 1
        %s430 = smul.addr %s429, 64
        %s431 = scalar_lea.vmem [#allocation14], %s430
        // Predicated region
        $region69: #{tpu_custom_call.1} parent=55 // pred_check
          %p432 = pneg %p173
        $region70: #{tpu_custom_call.1} parent=55 // pred_check_branch
          %434 = sbr.rel (%p432) target = $region72
        $region71: #{tpu_custom_call.1} parent=55 // pred_region
          %435 = dma.done %s428, 1024
        $region72: #{tpu_custom_call.1} parent=55 // pred_fallthru
          _
        %s436 = sand.u32 %s30, 1
        %s437 = scalar_lea.sflag [#allocation15], %s436
        %s438 = sand.u32 %s238, 1
        %s439 = smul.addr %s438, 64
        %s440 = scalar_lea.vmem [#allocation16], %s439
        // Predicated region
        $region73: #{tpu_custom_call.1} parent=55 // pred_check
          %p441 = pneg %p251
        $region74: #{tpu_custom_call.1} parent=55 // pred_check_branch
          %443 = sbr.rel (%p441) target = $region76
        $region75: #{tpu_custom_call.1} parent=55 // pred_region
          %444 = dma.done %s437, 1024
        $region76: #{tpu_custom_call.1} parent=55 // pred_fallthru
          _
        %s445 = sand.u32 %s50, 1
        %s446 = scalar_lea.sflag [#allocation9], %s445
        %s447 = sand.u32 %s50, 1
        %s448 = smul.addr %s447, 36
        %s449 = scalar_lea.vmem [#allocation8], %s448
        %p450 = pneg %p63
        %p451 = pneg %p60
        %p452 = pneg %p84
        %p453 = pneg %p81
        %p454 = pneg %p105
        %p455 = pneg %p102
        %p456 = pneg %p126
        %p457 = pneg %p123
        %p458 = pneg %p147
        %p459 = pneg %p144
        %s460 = sand.u32 %s30, 1
        %s461 = scalar_lea.sflag [#allocation15], %s460
        %s462 = sand.u32 %s160, 1
        %s463 = smul.addr %s462, 64
        %s464 = scalar_lea.vmem [#allocation14], %s463
        %p465 = pneg %p173
        %p466 = pneg %p170
        %p467 = scmp.lt.s32.totalorder %s35, 1
        %s468 = scalar_select %p467, %s35, 1
        %s469 = scalar_lea.vmem %s6, %s468
        %p470 = pneg %p199
        %p471 = pneg %p196
        %p472 = scmp.lt.s32.totalorder %s35, 1
        %s473 = scalar_select %p472, %s35, 1
        %s474 = scalar_lea.vmem %s7, %s473
        %p475 = pneg %p225
        %p476 = pneg %p222
        %s477 = sand.u32 %s30, 1
        %s478 = scalar_lea.sflag [#allocation15], %s477
        %s479 = sand.u32 %s238, 1
        %s480 = smul.addr %s479, 64
        %s481 = scalar_lea.vmem [#allocation16], %s480
        %p482 = pneg %p251
        %p483 = pneg %p248
        %p484 = pneg %p277
        %p485 = pneg %p274
        %s486 = sand.u32 %s264, 1
        %s487 = scalar_lea.sflag [#allocation10], %s486
        %s488 = sand.u32 %s264, 1
        %s489 = smul.addr %s488, 12
        %s490 = scalar_lea.vmem [#allocation17], %s489
        %s491 = smul.u32 3, %s34
        %p492 = scmp.lt.s32.totalorder %s35, 1
        %s493 = scalar_select %p492, %s35, 1
        %s494 = scalar_lea.vmem %s6, %s493
        %p495 = scmp.lt.s32.totalorder %s35, 1
        %s496 = scalar_select %p495, %s35, 1
        %s497 = scalar_lea.vmem %s7, %s496
        %s498 = smul.u32 16, %s35
        %s499 = smul.u32 3, %s34
        %p501 = scmp.eq.s32.totalorder %s35, 0
        // Predicated region
        $region77: #{tpu_custom_call.1} parent=55 // pred_check
          %p502 = pneg %p501
        $region78: #{tpu_custom_call.1} parent=55 // pred_check_branch
          %504 = sbr.rel (%p502) target = $region80
        $region79: #{tpu_custom_call.1} parent=55 // pred_region
          %v505 = vld [vmem:[%s414] sm:$0xff]
          %v506 = vld [vmem:[%s414 + $0x8] sm:$0xf]
          %v507 = vld [vmem:[%s414 + $0xc] sm:$0xff]
          %v508 = vld [vmem:[%s414 + $0x14] sm:$0xf]
          %v509 = vld [vmem:[%s414 + $0x18] sm:$0xff]
          %v510 = vld [vmem:[%s414 + $0x20] sm:$0xf]
          %v511 = vld [vmem:[#allocation11] sm:$0xf]
          %v512 = vld [vmem:[#allocation11 + $0x4] sm:$0xf]
          %v513 = vld [vmem:[#allocation11 + $0x8] sm:$0xf]
          %v514 = vld [vmem:[#allocation11 + $0xc] sm:$0xf]
          %v515 = vld [vmem:[#allocation11 + $0x10] sm:$0xf]
          %v516 = vld [vmem:[#allocation11 + $0x14] sm:$0xf]
          %v517 = vld [vmem:[#allocation11 + $0x18] sm:$0xf]
          %v518 = vld [vmem:[#allocation11 + $0x1c] sm:$0xf]
          %v519 = vld [vmem:[#allocation11 + $0x20] sm:$0xf]
          %v520 = vld [vmem:[#allocation11 + $0x24] sm:$0xf]
          %v521 = vld [vmem:[#allocation11 + $0x28] sm:$0xf]
          %v522 = vld [vmem:[#allocation11 + $0x2c] sm:$0xf]
          %v523 = vld [vmem:[#allocation11 + $0x30] sm:$0xf]
          %v524 = vld [vmem:[#allocation11 + $0x34] sm:$0xf]
          %v525 = vld [vmem:[#allocation11 + $0x38] sm:$0xf]
          %v526 = vld [vmem:[#allocation11 + $0x3c] sm:$0xf]
          %v527 = vld [vmem:[#allocation11 + $0x40] sm:$0xf]
          %v528 = vld [vmem:[#allocation11 + $0x44] sm:$0xf]
          %v529 = vld [vmem:[#allocation11 + $0x48] sm:$0xf]
          %v530 = vld [vmem:[#allocation11 + $0x4c] sm:$0xf]
          %v531 = vld [vmem:[#allocation11 + $0x50] sm:$0xf]
          %v532 = vld [vmem:[#allocation11 + $0x54] sm:$0xf]
          %v533 = vld [vmem:[#allocation11 + $0x58] sm:$0xf]
          %v534 = vld [vmem:[#allocation11 + $0x5c] sm:$0xf]
          %v535 = vld [vmem:[#allocation11 + $0x60] sm:$0xf]
          %v536 = vld [vmem:[#allocation11 + $0x64] sm:$0xf]
          %v537 = vld [vmem:[#allocation11 + $0x68] sm:$0xf]
          %v538 = vld [vmem:[#allocation11 + $0x6c] sm:$0xf]
          %v539 = vld [vmem:[#allocation11 + $0x70] sm:$0xf]
          %v540 = vld [vmem:[#allocation11 + $0x74] sm:$0xf]
          %v541 = vld [vmem:[#allocation11 + $0x78] sm:$0xf]
          %v542 = vld [vmem:[#allocation11 + $0x7c] sm:$0xf]
          %v543 = vld [vmem:[#allocation11 + $0x80] sm:$0xf]
          %v544 = vld [vmem:[#allocation11 + $0x84] sm:$0xf]
          %v545 = vld [vmem:[#allocation11 + $0x88] sm:$0xf]
          %v546 = vld [vmem:[#allocation11 + $0x8c] sm:$0xf]
          %v547 = vld [vmem:[%s2] sm:$0x1]
          %v549 = vlaneseq
          %v550 = vshrl.u32 %v549, 7
          %v551 = vsub.s32 0, %v550
          %v552 = vrot.slane %v547, %v551
          %v560 = vunpack.c.l.b16 %v505
          %v561 = vunpack.c.h.b16 %v505
          %v562 = vunpack.c.l.b16 %v506
          %v563 = vunpack.c.l.b16 %v507
          %v564 = vunpack.c.h.b16 %v507
          %v565 = vunpack.c.l.b16 %v508
          %v566 = vunpack.c.l.b16 %v509
          %v567 = vunpack.c.h.b16 %v509
          %v568 = vunpack.c.l.b16 %v510
          %v569 = vpack.c.b16 %v563, %v560
          %v570 = vpack.c.b16 %v564, %v561
          %v571 = vpack.c.b16 %v565, %v562
          %v572 = vpack.c.b16 %v566, %v566
          %v573 = vpack.c.b16 %v567, %v567
          %v574 = vpack.c.b16 %v568, %v568
          %v615 = vunpack.c.l.b16 %v511
          %v616 = vunpack.c.l.b16 %v512
          %v617 = vunpack.c.l.b16 %v513
          %v618 = vunpack.c.l.b16 %v514
          %v619 = vunpack.c.l.b16 %v515
          %v620 = vunpack.c.l.b16 %v516
          %v621 = vunpack.c.l.b16 %v517
          %v622 = vunpack.c.l.b16 %v518
          %v623 = vunpack.c.l.b16 %v519
          %v624 = vunpack.c.l.b16 %v520
          %v625 = vunpack.c.l.b16 %v521
          %v626 = vunpack.c.l.b16 %v522
          %v627 = vunpack.c.l.b16 %v523
          %v628 = vunpack.c.l.b16 %v524
          %v629 = vunpack.c.l.b16 %v525
          %v630 = vunpack.c.l.b16 %v526
          %v631 = vunpack.c.l.b16 %v527
          %v632 = vunpack.c.l.b16 %v528
          %v633 = vunpack.c.l.b16 %v529
          %v634 = vunpack.c.l.b16 %v530
          %v635 = vunpack.c.l.b16 %v531
          %v636 = vunpack.c.l.b16 %v532
          %v637 = vunpack.c.l.b16 %v533
          %v638 = vunpack.c.l.b16 %v534
          %v639 = vunpack.c.l.b16 %v535
          %v640 = vunpack.c.l.b16 %v536
          %v641 = vunpack.c.l.b16 %v537
          %v642 = vunpack.c.l.b16 %v538
          %v643 = vunpack.c.l.b16 %v539
          %v644 = vunpack.c.l.b16 %v540
          %v645 = vunpack.c.l.b16 %v541
          %v646 = vunpack.c.l.b16 %v542
          %v647 = vunpack.c.l.b16 %v543
          %v648 = vunpack.c.l.b16 %v544
          %v649 = vunpack.c.l.b16 %v545
          %v650 = vunpack.c.l.b16 %v546
          %v651 = vpack.c.b16 %v616, %v615
          %v652 = vpack.c.b16 %v618, %v617
          %v653 = vpack.c.b16 %v620, %v619
          %v654 = vpack.c.b16 %v622, %v621
          %v655 = vpack.c.b16 %v624, %v623
          %v656 = vpack.c.b16 %v626, %v625
          %v657 = vpack.c.b16 %v628, %v627
          %v658 = vpack.c.b16 %v630, %v629
          %v659 = vpack.c.b16 %v632, %v631
          %v660 = vpack.c.b16 %v634, %v633
          %v661 = vpack.c.b16 %v636, %v635
          %v662 = vpack.c.b16 %v638, %v637
          %v663 = vpack.c.b16 %v640, %v639
          %v664 = vpack.c.b16 %v642, %v641
          %v665 = vpack.c.b16 %v644, %v643
          %v666 = vpack.c.b16 %v646, %v645
          %v667 = vpack.c.b16 %v648, %v647
          %v668 = vpack.c.b16 %v650, %v649
          %vm687 = vcmask 261120
          %v689 = vsel %vm687, %v571, 0
          %v692 = vsel %vm687, %v574, 0
          %694 = vmatprep.subr.bf16.mxu0 0
          %695 = vmatpush1.bf16.msra.mxu0 %v651
          %696 = vmatprep.subr.bf16.mxu0 0
          %697 = vmatpush1.bf16.msra.mxu0 %v652
          %698 = vmatprep.subr.bf16.mxu0 0
          %699 = vmatpush1.bf16.msra.mxu0 %v653
          %700 = vmatprep.subr.bf16.mxu0 0
          %701 = vmatpush1.bf16.msra.mxu0 %v654
          %702 = vmatprep.subr.bf16.mxu0 0
          %703 = vmatpush1.bf16.msra.mxu0 %v655
          %704 = vmatprep.subr.bf16.mxu0 0
          %705 = vmatpush1.bf16.msra.mxu0 %v656
          %706 = vmatprep.subr.bf16.mxu0 0
          %707 = vmatpush1.bf16.msra.mxu0 %v657
          %708 = vmatprep.subr.bf16.mxu0 0
          %709 = vmatpush1.bf16.msra.mxu0 %v658
          %710 = vmatprep.subr.bf16.mxu0 0
          %711 = vmatpush1.bf16.msra.mxu0 %v659
          %712 = vmatprep.subr.bf16.mxu0 0
          %713 = vmatpush1.bf16.msra.mxu0 %v660
          %714 = vmatprep.subr.bf16.mxu0 0
          %715 = vmatpush1.bf16.msra.mxu0 %v661
          %716 = vmatprep.subr.bf16.mxu0 0
          %717 = vmatpush1.bf16.msra.mxu0 %v662
          %718 = vmatprep.subr.bf16.mxu0 0
          %719 = vmatpush1.bf16.msra.mxu0 %v663
          %720 = vmatprep.subr.bf16.mxu0 0
          %721 = vmatpush1.bf16.msra.mxu0 %v664
          %722 = vmatprep.subr.bf16.mxu0 0
          %723 = vmatpush1.bf16.msra.mxu0 %v665
          %724 = vmatprep.subr.bf16.mxu0 0
          %725 = vmatpush1.bf16.msra.mxu0 %v666
          %726 = vmatprep.mubr.bf16.mxu0 %v570
          %727 = vmatmul.mubr.bf16.gmra.mrb[0].mxu0 %v569
          %v728 = vpop.f32.mrb[0].mxu0
          %v729 = vadd.f32 %v552, %v728
          %v730 = vpop.f32.mrb[0].mxu0
          %v731 = vpop.f32.mrb[0].mxu0
          %v732 = vadd.f32 %v552, %v731
          %v733 = vpop.f32.mrb[0].mxu0
          %734 = vmatprep.mubr.bf16.mxu0 %v573
          %735 = vmatmul.mubr.bf16.gmra.mrb[0].mxu0 %v572
          %v736 = vpop.f32.mrb[0].mxu0
          %v737 = vadd.f32 %v552, %v736
          %v738 = vpop.f32.mrb[0].mxu0
          %v739 = vpop.f32.mrb[0].mxu0
          %v740 = vpop.f32.mrb[0].mxu0
          %741 = vdwg.mxu0
          %742 = vmatprep.subr.bf16.mxu0 0
          %743 = vmatpush1.bf16.msra.mxu0 %v667
          %744 = vmatprep.subr.bf16.mxu0 0
          %745 = vmatpush1.bf16.msra.mxu0 %v668
          %746 = vmatprep.subr.bf16.mxu0 0
          %747 = vmatpush1.bf16.msra.mxu0 0
          %748 = vmatprep.subr.bf16.mxu0 0
          %749 = vmatpush1.bf16.msra.mxu0 0
          %750 = vmatprep.subr.bf16.mxu0 0
          %751 = vmatpush1.bf16.msra.mxu0 0
          %752 = vmatprep.subr.bf16.mxu0 0
          %753 = vmatpush1.bf16.msra.mxu0 0
          %754 = vmatprep.subr.bf16.mxu0 0
          %755 = vmatpush1.bf16.msra.mxu0 0
          %756 = vmatprep.subr.bf16.mxu0 0
          %757 = vmatpush1.bf16.msra.mxu0 0
          %758 = vmatprep.subr.bf16.mxu0 0
          %759 = vmatpush1.bf16.msra.mxu0 0
          %760 = vmatprep.subr.bf16.mxu0 0
          %761 = vmatpush1.bf16.msra.mxu0 0
          %762 = vmatprep.subr.bf16.mxu0 0
          %763 = vmatpush1.bf16.msra.mxu0 0
          %764 = vmatprep.subr.bf16.mxu0 0
          %765 = vmatpush1.bf16.msra.mxu0 0
          %766 = vmatprep.subr.bf16.mxu0 0
          %767 = vmatpush1.bf16.msra.mxu0 0
          %768 = vmatprep.subr.bf16.mxu0 0
          %769 = vmatpush1.bf16.msra.mxu0 0
          %770 = vmatprep.subr.bf16.mxu0 0
          %771 = vmatpush1.bf16.msra.mxu0 0
          %772 = vmatprep.subr.bf16.mxu0 0
          %773 = vmatpush1.bf16.msra.mxu0 0
          %774 = vmatprep.mubr.bf16.mxu0 0
          %775 = vmatmul.mubr.bf16.gmra.mrb[0].mxu0 %v689
          %v776 = vpop.f32.mrb[0].mxu0
          %v777 = vadd.f32 %v729, %v776
          %v778 = vpop.f32.mrb[0].mxu0
          %v779 = vpop.f32.mrb[0].mxu0
          %v780 = vadd.f32 %v732, %v779
          %v781 = vpop.f32.mrb[0].mxu0
          %782 = vmatprep.mubr.bf16.mxu0 0
          %783 = vmatmul.mubr.bf16.gmra.mrb[0].mxu0 %v692
          %v784 = vpop.f32.mrb[0].mxu0
          %v785 = vadd.f32 %v737, %v784
          %v786 = vpop.f32.mrb[0].mxu0
          %v787 = vpop.f32.mrb[0].mxu0
          %v788 = vpop.f32.mrb[0].mxu0
          %789 = vdwg.mxu0
          %v790 = vld [vmem:[%s3] sm:$0x1]
          %v792 = vlaneseq
          %v793 = vshrl.u32 %v792, 7
          %v794 = vsub.s32 0, %v793
          %v795 = vrot.slane %v790, %v794
          %v797 = vmul.f32 %v777, %v795
          %v798 = vmul.f32 %v780, %v795
          %v799 = vmul.f32 %v785, %v795
          %800 = vadd.xlane.f32.xlu0 %v797
          %v801 = vpop.xlane.xlu0 %800
          %802 = vadd.xlane.f32.xlu0 %v798
          %v803 = vpop.xlane.xlu0 %802
          %804 = vadd.xlane.f32.xlu0 %v799
          %v805 = vpop.xlane.xlu0 %804
          %v806 = vld [vmem:[#allocation13] sm:$0xff]
          %v807 = vld [vmem:[#allocation13 + $0x8] sm:$0xff]
          %v808 = vld [vmem:[#allocation13 + $0x10] sm:$0xff]
          %v809 = vld [vmem:[#allocation13 + $0x18] sm:$0xff]
          %v810 = vld [vmem:[#allocation13 + $0x20] sm:$0xff]
          %v811 = vld [vmem:[#allocation13 + $0x28] sm:$0xff]
          %v812 = vld [vmem:[#allocation13 + $0x30] sm:$0xff]
          %v813 = vld [vmem:[#allocation13 + $0x38] sm:$0xff]
          %v814 = vld [vmem:[#allocation13 + $0x40] sm:$0xff]
          %v815 = vld [vmem:[#allocation13 + $0x48] sm:$0xff]
          %v816 = vld [vmem:[#allocation13 + $0x50] sm:$0xff]
          %v817 = vld [vmem:[#allocation13 + $0x58] sm:$0xff]
          %v818 = vld [vmem:[#allocation13 + $0x60] sm:$0xff]
          %v819 = vld [vmem:[#allocation13 + $0x68] sm:$0xff]
          %v820 = vld [vmem:[#allocation13 + $0x70] sm:$0xff]
          %v821 = vld [vmem:[#allocation13 + $0x78] sm:$0xff]
          %822 = vmatprep.subr.mxu0 0.0
          %823 = vmatpush1.msra.mxu0 %v806
          %824 = vmatprep.subr.mxu0 0.0
          %825 = vmatpush1.msra.mxu0 %v807
          %826 = vmatprep.subr.mxu0 0.0
          %827 = vmatpush1.msra.mxu0 %v808
          %828 = vmatprep.subr.mxu0 0.0
          %829 = vmatpush1.msra.mxu0 %v809
          %830 = vmatprep.subr.mxu0 0.0
          %831 = vmatpush1.msra.mxu0 %v810
          %832 = vmatprep.subr.mxu0 0.0
          %833 = vmatpush1.msra.mxu0 %v811
          %834 = vmatprep.subr.mxu0 0.0
          %835 = vmatpush1.msra.mxu0 %v812
          %836 = vmatprep.subr.mxu0 0.0
          %837 = vmatpush1.msra.mxu0 %v813
          %838 = vmatprep.subr.mxu0 0.0
          %839 = vmatpush1.msra.mxu0 %v814
          %840 = vmatprep.subr.mxu0 0.0
          %841 = vmatpush1.msra.mxu0 %v815
          %842 = vmatprep.subr.mxu0 0.0
          %843 = vmatpush1.msra.mxu0 %v816
          %844 = vmatprep.subr.mxu0 0.0
          %845 = vmatpush1.msra.mxu0 %v817
          %846 = vmatprep.subr.mxu0 0.0
          %847 = vmatpush1.msra.mxu0 %v818
          %848 = vmatprep.subr.mxu0 0.0
          %849 = vmatpush1.msra.mxu0 %v819
          %850 = vmatprep.subr.mxu0 0.0
          %851 = vmatpush1.msra.mxu0 %v820
          %852 = vmatprep.subr.mxu0 0.0
          %853 = vmatpush1.msra.mxu0 %v821
          %854 = vmatprep.subr.mxu0 0.0
          %855 = vmatpush1.msra.mxu0 0.0
          %856 = vmatprep.subr.mxu0 0.0
          %857 = vmatpush1.msra.mxu0 0.0
          %858 = vmatprep.subr.mxu0 0.0
          %859 = vmatpush1.msra.mxu0 0.0
          %860 = vmatprep.subr.mxu0 0.0
          %861 = vmatpush1.msra.mxu0 0.0
          %862 = vmatprep.subr.mxu0 0.0
          %863 = vmatpush1.msra.mxu0 0.0
          %864 = vmatprep.subr.mxu0 0.0
          %865 = vmatpush1.msra.mxu0 0.0
          %866 = vmatprep.subr.mxu0 0.0
          %867 = vmatpush1.msra.mxu0 0.0
          %868 = vmatprep.subr.mxu0 0.0
          %869 = vmatpush1.msra.mxu0 0.0
          %870 = vmatprep.subr.mxu0 0.0
          %871 = vmatpush1.msra.mxu0 0.0
          %872 = vmatprep.subr.mxu0 0.0
          %873 = vmatpush1.msra.mxu0 0.0
          %874 = vmatprep.subr.mxu0 0.0
          %875 = vmatpush1.msra.mxu0 0.0
          %876 = vmatprep.subr.mxu0 0.0
          %877 = vmatpush1.msra.mxu0 0.0
          %878 = vmatprep.subr.mxu0 0.0
          %879 = vmatpush1.msra.mxu0 0.0
          %880 = vmatprep.subr.mxu0 0.0
          %881 = vmatpush1.msra.mxu0 0.0
          %882 = vmatprep.subr.mxu0 0.0
          %883 = vmatpush1.msra.mxu0 0.0
          %884 = vmatprep.subr.mxu0 0.0
          %885 = vmatpush1.msra.mxu0 0.0
          %886 = vmatprep.mubr.f32.mxu0 0.0
          %887 = vmatmul.mubr.f32.gmra.mrb[0].mxu0 %v777
          %v888 = vpop.f32.mrb[0].mxu0
          %v889 = vadd.f32 0.0, %v888
          %v890 = vpop.f32.mrb[0].mxu0
          %891 = vmatprep.mubr.f32.mxu0 0.0
          %892 = vmatmul.mubr.f32.gmra.mrb[0].mxu0 %v780
          %v893 = vpop.f32.mrb[0].mxu0
          %v894 = vadd.f32 0.0, %v893
          %v895 = vpop.f32.mrb[0].mxu0
          %896 = vmatprep.mubr.f32.mxu0 0.0
          %897 = vmatmul.mubr.f32.gmra.mrb[0].mxu0 %v785
          %v898 = vpop.f32.mrb[0].mxu0
          %v899 = vadd.f32 0.0, %v898
          %v900 = vpop.f32.mrb[0].mxu0
          %901 = vdwg.mxu0
          %v902 = vmul.f32 %v889, %v777
          %v903 = vmul.f32 %v894, %v780
          %v904 = vmul.f32 %v899, %v785
          %905 = vadd.xlane.f32.xlu0 %v902
          %v906 = vpop.xlane.xlu0 %905
          %907 = vadd.xlane.f32.xlu0 %v903
          %v908 = vpop.xlane.xlu0 %907
          %909 = vadd.xlane.f32.xlu0 %v904
          %v910 = vpop.xlane.xlu0 %909
          %vm911 = vcmask 7168
          %912 = vst.msk [vmem:[#allocation3] sm:$0xff] %vm911, %v801
          %913 = vst.msk [vmem:[#allocation3 + $0x8] sm:$0xff] %vm911, %v803
          %914 = vst.msk [vmem:[#allocation3 + $0x10] sm:$0xff] %vm911, %v805
          %v915 = vmax.f32 %v906, 0.0
          %v916 = vmax.f32 %v908, 0.0
          %v917 = vmax.f32 %v910, 0.0
          %v918 = vadd.f32 %v915, 1e-05
          %v919 = vadd.f32 %v916, 1e-05
          %v920 = vadd.f32 %v917, 1e-05
          %v921 = vrsqrt.pop %v918
          %v922 = vrsqrt.pop %v919
          %v923 = vrsqrt.pop %v920
          %924 = vst.msk [vmem:[#allocation4] sm:$0xff] %vm911, %v921
          %925 = vst.msk [vmem:[#allocation4 + $0x8] sm:$0xff] %vm911, %v922
          %926 = vst.msk [vmem:[#allocation4 + $0x10] sm:$0xff] %vm911, %v923
          %v927 = vpack.c.bf16 %v780, %v777
          %v928 = vpack.c.bf16 %v785, %v785
          %v931 = vunpack.c.l.b16 %v927
          %v932 = vunpack.c.h.b16 %v927
          %v933 = vunpack.c.l.b16 %v928
          %v934 = vpack.c.b16 %v931, %v931
          %v935 = vpack.c.b16 %v932, %v932
          %v936 = vpack.c.b16 %v933, %v933
          %940 = vst [vmem:[#allocation2] sm:$0xf] %v934
          %941 = vst [vmem:[#allocation2 + $0x4] sm:$0xf] %v935
          %942 = vst [vmem:[#allocation2 + $0x8] sm:$0xf] %v936
          %943 = vst.msk [vmem:[#allocation5] sm:$0xff] %vm911, -inf
          %944 = vst.msk [vmem:[#allocation5 + $0x8] sm:$0xff] %vm911, -inf
          %945 = vst.msk [vmem:[#allocation5 + $0x10] sm:$0xff] %vm911, -inf
          %946 = vst.msk [vmem:[#allocation6] sm:$0xff] %vm911, 0.0
          %947 = vst.msk [vmem:[#allocation6 + $0x8] sm:$0xff] %vm911, 0.0
          %948 = vst.msk [vmem:[#allocation6 + $0x10] sm:$0xff] %vm911, 0.0
          %949 = vst [vmem:[#allocation7] sm:$0xff] 0.0
          %950 = vst [vmem:[#allocation7 + $0x8] sm:$0xff] 0.0
          %951 = vst [vmem:[#allocation7 + $0x10] sm:$0xff] 0.0
        $region80: #{tpu_custom_call.1} parent=55 // pred_fallthru
          _
        %v952 = vld [vmem:[#allocation2] sm:$0xf]
        %v953 = vld [vmem:[#allocation2 + $0x4] sm:$0xf]
        %v954 = vld [vmem:[#allocation2 + $0x8] sm:$0xf]
        %v955 = vld [vmem:[%s431] sm:$0xf]
        %v956 = vld [vmem:[%s431 + $0x4] sm:$0xf]
        %v957 = vld [vmem:[%s431 + $0x8] sm:$0xf]
        %v958 = vld [vmem:[%s431 + $0xc] sm:$0xf]
        %v959 = vld [vmem:[%s431 + $0x10] sm:$0xf]
        %v960 = vld [vmem:[%s431 + $0x14] sm:$0xf]
        %v961 = vld [vmem:[%s431 + $0x18] sm:$0xf]
        %v962 = vld [vmem:[%s431 + $0x1c] sm:$0xf]
        %v963 = vld [vmem:[%s431 + $0x20] sm:$0xf]
        %v964 = vld [vmem:[%s431 + $0x24] sm:$0xf]
        %v965 = vld [vmem:[%s431 + $0x28] sm:$0xf]
        %v966 = vld [vmem:[%s431 + $0x2c] sm:$0xf]
        %v967 = vld [vmem:[%s431 + $0x30] sm:$0xf]
        %v968 = vld [vmem:[%s431 + $0x34] sm:$0xf]
        %v969 = vld [vmem:[%s431 + $0x38] sm:$0xf]
        %v970 = vld [vmem:[%s431 + $0x3c] sm:$0xf]
        %v974 = vunpack.c.l.b16 %v952
        %v975 = vunpack.c.l.b16 %v953
        %v976 = vunpack.c.l.b16 %v954
        %v977 = vpack.c.b16 %v975, %v974
        %v978 = vpack.c.b16 %v976, %v976
        %v997 = vunpack.c.l.b16 %v955
        %v998 = vunpack.c.l.b16 %v956
        %v999 = vunpack.c.l.b16 %v957
        %v1000 = vunpack.c.l.b16 %v958
        %v1001 = vunpack.c.l.b16 %v959
        %v1002 = vunpack.c.l.b16 %v960
        %v1003 = vunpack.c.l.b16 %v961
        %v1004 = vunpack.c.l.b16 %v962
        %v1005 = vunpack.c.l.b16 %v963
        %v1006 = vunpack.c.l.b16 %v964
        %v1007 = vunpack.c.l.b16 %v965
        %v1008 = vunpack.c.l.b16 %v966
        %v1009 = vunpack.c.l.b16 %v967
        %v1010 = vunpack.c.l.b16 %v968
        %v1011 = vunpack.c.l.b16 %v969
        %v1012 = vunpack.c.l.b16 %v970
        %v1013 = vpack.c.b16 %v998, %v997
        %v1014 = vpack.c.b16 %v1000, %v999
        %v1015 = vpack.c.b16 %v1002, %v1001
        %v1016 = vpack.c.b16 %v1004, %v1003
        %v1017 = vpack.c.b16 %v1006, %v1005
        %v1018 = vpack.c.b16 %v1008, %v1007
        %v1019 = vpack.c.b16 %v1010, %v1009
        %v1020 = vpack.c.b16 %v1012, %v1011
        %1029 = vmatprep.subr.bf16.mxu0 0
        %1030 = vmatpush1.bf16.msra.mxu0 %v1013
        %1031 = vmatprep.subr.bf16.mxu0 0
        %1032 = vmatpush1.bf16.msra.mxu0 %v1014
        %1033 = vmatprep.subr.bf16.mxu0 0
        %1034 = vmatpush1.bf16.msra.mxu0 %v1015
        %1035 = vmatprep.subr.bf16.mxu0 0
        %1036 = vmatpush1.bf16.msra.mxu0 %v1016
        %1037 = vmatprep.subr.bf16.mxu0 0
        %1038 = vmatpush1.bf16.msra.mxu0 %v1017
        %1039 = vmatprep.subr.bf16.mxu0 0
        %1040 = vmatpush1.bf16.msra.mxu0 %v1018
        %1041 = vmatprep.subr.bf16.mxu0 0
        %1042 = vmatpush1.bf16.msra.mxu0 %v1019
        %1043 = vmatprep.subr.bf16.mxu0 0
        %1044 = vmatpush1.bf16.msra.mxu0 %v1020
        %1045 = vmatprep.subr.bf16.mxu0 0
        %1046 = vmatpush1.bf16.msra.mxu0 0
        %1047 = vmatprep.subr.bf16.mxu0 0
        %1048 = vmatpush1.bf16.msra.mxu0 0
        %1049 = vmatprep.subr.bf16.mxu0 0
        %1050 = vmatpush1.bf16.msra.mxu0 0
        %1051 = vmatprep.subr.bf16.mxu0 0
        %1052 = vmatpush1.bf16.msra.mxu0 0
        %1053 = vmatprep.subr.bf16.mxu0 0
        %1054 = vmatpush1.bf16.msra.mxu0 0
        %1055 = vmatprep.subr.bf16.mxu0 0
        %1056 = vmatpush1.bf16.msra.mxu0 0
        %1057 = vmatprep.subr.bf16.mxu0 0
        %1058 = vmatpush1.bf16.msra.mxu0 0
        %1059 = vmatprep.subr.bf16.mxu0 0
        %1060 = vmatpush1.bf16.msra.mxu0 0
        %1061 = vmatprep.mubr.bf16.mxu0 0
        %1062 = vmatmul.mubr.bf16.gmra.mrb[0].mxu0 %v977
        %v1063 = vpop.f32.mrb[0].mxu0
        %v1064 = vadd.f32 0.0, %v1063
        %v1065 = vpop.f32.mrb[0].mxu0
        %v1066 = vpop.f32.mrb[0].mxu0
        %v1067 = vadd.f32 0.0, %v1066
        %v1068 = vpop.f32.mrb[0].mxu0
        %1069 = vmatprep.mubr.bf16.mxu0 0
        %1070 = vmatmul.mubr.bf16.gmra.mrb[0].mxu0 %v978
        %v1071 = vpop.f32.mrb[0].mxu0
        %v1072 = vadd.f32 0.0, %v1071
        %v1073 = vpop.f32.mrb[0].mxu0
        %v1074 = vpop.f32.mrb[0].mxu0
        %v1075 = vpop.f32.mrb[0].mxu0
        %1076 = vdwg.mxu0
        %v1077 = vld [vmem:[#allocation3] sm:$0xff]
        %v1078 = vld [vmem:[#allocation3 + $0x8] sm:$0xff]
        %v1079 = vld [vmem:[#allocation3 + $0x10] sm:$0xff]
        %1081 = vset.pattern.permute.xlu0 0
        %1082 = vperm.xlu0 %1081, %v1077
        %v1083 = vpop.permute.xlu0 %1082
        %1086 = vset.pattern.permute.xlu0 0
        %1087 = vperm.xlu0 %1086, %v1078
        %v1088 = vpop.permute.xlu0 %1087
        %1091 = vset.pattern.permute.xlu0 0
        %1092 = vperm.xlu0 %1091, %v1079
        %v1093 = vpop.permute.xlu0 %1092
        %v1095 = vsub.f32 %v1064, %v1083
        %v1096 = vsub.f32 %v1067, %v1088
        %v1097 = vsub.f32 %v1072, %v1093
        %v1098 = vld [vmem:[#allocation4] sm:$0xff]
        %v1099 = vld [vmem:[#allocation4 + $0x8] sm:$0xff]
        %v1100 = vld [vmem:[#allocation4 + $0x10] sm:$0xff]
        %1102 = vset.pattern.permute.xlu0 0
        %1103 = vperm.xlu0 %1102, %v1098
        %v1104 = vpop.permute.xlu0 %1103
        %1107 = vset.pattern.permute.xlu0 0
        %1108 = vperm.xlu0 %1107, %v1099
        %v1109 = vpop.permute.xlu0 %1108
        %1112 = vset.pattern.permute.xlu0 0
        %1113 = vperm.xlu0 %1112, %v1100
        %v1114 = vpop.permute.xlu0 %1113
        %v1116 = vmul.f32 %v1095, %v1104
        %v1117 = vmul.f32 %v1096, %v1109
        %v1118 = vmul.f32 %v1097, %v1114
        %v1119 = vld [vmem:[%s494] sm:$0x1]
        %v1121 = vlaneseq
        %v1122 = vshrl.u32 %v1121, 7
        %v1123 = vsub.s32 0, %v1122
        %v1124 = vrot.slane %v1119, %v1123
        %v1126 = vmul.f32 %v1116, %v1124
        %v1127 = vmul.f32 %v1117, %v1124
        %v1128 = vmul.f32 %v1118, %v1124
        %v1129 = vld [vmem:[%s497] sm:$0x1]
        %v1131 = vlaneseq
        %v1132 = vshrl.u32 %v1131, 7
        %v1133 = vsub.s32 0, %v1132
        %v1134 = vrot.slane %v1129, %v1133
        %v1136 = vadd.f32 %v1126, %v1134
        %v1137 = vadd.f32 %v1127, %v1134
        %v1138 = vadd.f32 %v1128, %v1134
        %v1139 = vld [vmem:[#allocation5] sm:$0xff]
        %v1140 = vld [vmem:[#allocation5 + $0x8] sm:$0xff]
        %v1141 = vld [vmem:[#allocation5 + $0x10] sm:$0xff]
        %1142 = vmax.xlane.f32.xlu0 %v1136
        %v1143 = vpop.xlane.xlu0 %1142
        %1144 = vmax.xlane.f32.xlu0 %v1137
        %v1145 = vpop.xlane.xlu0 %1144
        %1146 = vmax.xlane.f32.xlu0 %v1138
        %v1147 = vpop.xlane.xlu0 %1146
        %v1148 = vmax.f32 %v1139, %v1143
        %v1149 = vmax.f32 %v1140, %v1145
        %v1150 = vmax.f32 %v1141, %v1147
        %v1151 = vsub.f32 %v1139, %v1148
        %v1152 = vsub.f32 %v1140, %v1149
        %v1153 = vsub.f32 %v1141, %v1150
        %v1154 = vmul.f32 %v1151, 1.442695
        %v1155 = vpow.pop %v1154
        %v1156 = vmul.f32 %v1152, 1.442695
        %v1157 = vpow.pop %v1156
        %v1158 = vmul.f32 %v1153, 1.442695
        %v1159 = vpow.pop %v1158
        %1161 = vset.pattern.permute.xlu0 0
        %1162 = vperm.xlu0 %1161, %v1148
        %v1163 = vpop.permute.xlu0 %1162
        %1166 = vset.pattern.permute.xlu0 0
        %1167 = vperm.xlu0 %1166, %v1149
        %v1168 = vpop.permute.xlu0 %1167
        %1171 = vset.pattern.permute.xlu0 0
        %1172 = vperm.xlu0 %1171, %v1150
        %v1173 = vpop.permute.xlu0 %1172
        %v1175 = vsub.f32 %v1136, %v1163
        %v1176 = vsub.f32 %v1137, %v1168
        %v1177 = vsub.f32 %v1138, %v1173
        %v1178 = vmul.f32 %v1175, 1.442695
        %v1179 = vpow.pop %v1178
        %v1180 = vmul.f32 %v1176, 1.442695
        %v1181 = vpow.pop %v1180
        %v1182 = vmul.f32 %v1177, 1.442695
        %v1183 = vpow.pop %v1182
        %v1184 = vld [vmem:[#allocation6] sm:$0xff]
        %v1185 = vld [vmem:[#allocation6 + $0x8] sm:$0xff]
        %v1186 = vld [vmem:[#allocation6 + $0x10] sm:$0xff]
        %v1187 = vmul.f32 %v1184, %v1155
        %v1188 = vmul.f32 %v1185, %v1157
        %v1189 = vmul.f32 %v1186, %v1159
        %1190 = vadd.xlane.f32.xlu0 %v1179
        %v1191 = vpop.xlane.xlu0 %1190
        %1192 = vadd.xlane.f32.xlu0 %v1181
        %v1193 = vpop.xlane.xlu0 %1192
        %1194 = vadd.xlane.f32.xlu0 %v1183
        %v1195 = vpop.xlane.xlu0 %1194
        %v1196 = vadd.f32 %v1187, %v1191
        %v1197 = vadd.f32 %v1188, %v1193
        %v1198 = vadd.f32 %v1189, %v1195
        %vm1199 = vcmask 7168
        %1200 = vst.msk [vmem:[#allocation6] sm:$0xff] %vm1199, %v1196
        %1201 = vst.msk [vmem:[#allocation6 + $0x8] sm:$0xff] %vm1199, %v1197
        %1202 = vst.msk [vmem:[#allocation6 + $0x10] sm:$0xff] %vm1199, %v1198
        %v1203 = vld [vmem:[#allocation7] sm:$0xff]
        %v1204 = vld [vmem:[#allocation7 + $0x8] sm:$0xff]
        %v1205 = vld [vmem:[#allocation7 + $0x10] sm:$0xff]
        %1207 = vset.pattern.permute.xlu0 0
        %1208 = vperm.xlu0 %1207, %v1155
        %v1209 = vpop.permute.xlu0 %1208
        %1212 = vset.pattern.permute.xlu0 0
        %1213 = vperm.xlu0 %1212, %v1157
        %v1214 = vpop.permute.xlu0 %1213
        %1217 = vset.pattern.permute.xlu0 0
        %1218 = vperm.xlu0 %1217, %v1159
        %v1219 = vpop.permute.xlu0 %1218
        %v1221 = vmul.f32 %v1203, %v1209
        %v1222 = vmul.f32 %v1204, %v1214
        %v1223 = vmul.f32 %v1205, %v1219
        %v1224 = vpack.c.bf16 %v1181, %v1179
        %v1225 = vpack.c.bf16 %v1183, %v1183
        %v1226 = vld [vmem:[%s440] sm:$0xf]
        %v1227 = vld [vmem:[%s440 + $0x4] sm:$0xf]
        %v1228 = vld [vmem:[%s440 + $0x8] sm:$0xf]
        %v1229 = vld [vmem:[%s440 + $0xc] sm:$0xf]
        %v1230 = vld [vmem:[%s440 + $0x10] sm:$0xf]
        %v1231 = vld [vmem:[%s440 + $0x14] sm:$0xf]
        %v1232 = vld [vmem:[%s440 + $0x18] sm:$0xf]
        %v1233 = vld [vmem:[%s440 + $0x1c] sm:$0xf]
        %v1234 = vld [vmem:[%s440 + $0x20] sm:$0xf]
        %v1235 = vld [vmem:[%s440 + $0x24] sm:$0xf]
        %v1236 = vld [vmem:[%s440 + $0x28] sm:$0xf]
        %v1237 = vld [vmem:[%s440 + $0x2c] sm:$0xf]
        %v1238 = vld [vmem:[%s440 + $0x30] sm:$0xf]
        %v1239 = vld [vmem:[%s440 + $0x34] sm:$0xf]
        %v1240 = vld [vmem:[%s440 + $0x38] sm:$0xf]
        %v1241 = vld [vmem:[%s440 + $0x3c] sm:$0xf]
        %v1258 = vunpack.c.l.b16 %v1226
        %v1259 = vunpack.c.l.b16 %v1227
        %v1260 = vunpack.c.l.b16 %v1228
        %v1261 = vunpack.c.l.b16 %v1229
        %v1262 = vunpack.c.l.b16 %v1230
        %v1263 = vunpack.c.l.b16 %v1231
        %v1264 = vunpack.c.l.b16 %v1232
        %v1265 = vunpack.c.l.b16 %v1233
        %v1266 = vunpack.c.l.b16 %v1234
        %v1267 = vunpack.c.l.b16 %v1235
        %v1268 = vunpack.c.l.b16 %v1236
        %v1269 = vunpack.c.l.b16 %v1237
        %v1270 = vunpack.c.l.b16 %v1238
        %v1271 = vunpack.c.l.b16 %v1239
        %v1272 = vunpack.c.l.b16 %v1240
        %v1273 = vunpack.c.l.b16 %v1241
        %v1274 = vpack.c.b16 %v1259, %v1258
        %v1275 = vpack.c.b16 %v1261, %v1260
        %v1276 = vpack.c.b16 %v1263, %v1262
        %v1277 = vpack.c.b16 %v1265, %v1264
        %v1278 = vpack.c.b16 %v1267, %v1266
        %v1279 = vpack.c.b16 %v1269, %v1268
        %v1280 = vpack.c.b16 %v1271, %v1270
        %v1281 = vpack.c.b16 %v1273, %v1272
        %1290 = vmatprep.subr.bf16.mxu0 0
        %1291 = vmatpush1.bf16.msra.mxu0 %v1274
        %1292 = vmatprep.subr.bf16.mxu0 0
        %1293 = vmatpush1.bf16.msra.mxu0 %v1275
        %1294 = vmatprep.subr.bf16.mxu0 0
        %1295 = vmatpush1.bf16.msra.mxu0 %v1276
        %1296 = vmatprep.subr.bf16.mxu0 0
        %1297 = vmatpush1.bf16.msra.mxu0 %v1277
        %1298 = vmatprep.subr.bf16.mxu0 0
        %1299 = vmatpush1.bf16.msra.mxu0 %v1278
        %1300 = vmatprep.subr.bf16.mxu0 0
        %1301 = vmatpush1.bf16.msra.mxu0 %v1279
        %1302 = vmatprep.subr.bf16.mxu0 0
        %1303 = vmatpush1.bf16.msra.mxu0 %v1280
        %1304 = vmatprep.subr.bf16.mxu0 0
        %1305 = vmatpush1.bf16.msra.mxu0 %v1281
        %1306 = vmatprep.subr.bf16.mxu0 0
        %1307 = vmatpush1.bf16.msra.mxu0 0
        %1308 = vmatprep.subr.bf16.mxu0 0
        %1309 = vmatpush1.bf16.msra.mxu0 0
        %1310 = vmatprep.subr.bf16.mxu0 0
        %1311 = vmatpush1.bf16.msra.mxu0 0
        %1312 = vmatprep.subr.bf16.mxu0 0
        %1313 = vmatpush1.bf16.msra.mxu0 0
        %1314 = vmatprep.subr.bf16.mxu0 0
        %1315 = vmatpush1.bf16.msra.mxu0 0
        %1316 = vmatprep.subr.bf16.mxu0 0
        %1317 = vmatpush1.bf16.msra.mxu0 0
        %1318 = vmatprep.subr.bf16.mxu0 0
        %1319 = vmatpush1.bf16.msra.mxu0 0
        %1320 = vmatprep.subr.bf16.mxu0 0
        %1321 = vmatpush1.bf16.msra.mxu0 0
        %1322 = vmatprep.mubr.bf16.mxu0 0
        %1323 = vmatmul.mubr.bf16.gmra.mrb[0].mxu0 %v1224
        %v1324 = vpop.f32.mrb[0].mxu0
        %v1325 = vadd.f32 0.0, %v1324
        %v1326 = vpop.f32.mrb[0].mxu0
        %v1327 = vpop.f32.mrb[0].mxu0
        %v1328 = vadd.f32 0.0, %v1327
        %v1329 = vpop.f32.mrb[0].mxu0
        %1330 = vmatprep.mubr.bf16.mxu0 0
        %1331 = vmatmul.mubr.bf16.gmra.mrb[0].mxu0 %v1225
        %v1332 = vpop.f32.mrb[0].mxu0
        %v1333 = vadd.f32 0.0, %v1332
        %v1334 = vpop.f32.mrb[0].mxu0
        %v1335 = vpop.f32.mrb[0].mxu0
        %v1336 = vpop.f32.mrb[0].mxu0
        %1337 = vdwg.mxu0
        %v1338 = vadd.f32 %v1221, %v1325
        %v1339 = vadd.f32 %v1222, %v1328
        %v1340 = vadd.f32 %v1223, %v1333
        %1341 = vst [vmem:[#allocation7] sm:$0xff] %v1338
        %1342 = vst [vmem:[#allocation7 + $0x8] sm:$0xff] %v1339
        %1343 = vst [vmem:[#allocation7 + $0x10] sm:$0xff] %v1340
        %1344 = vst.msk [vmem:[#allocation5] sm:$0xff] %vm1199, %v1148
        %1345 = vst.msk [vmem:[#allocation5 + $0x8] sm:$0xff] %vm1199, %v1149
        %1346 = vst.msk [vmem:[#allocation5 + $0x10] sm:$0xff] %vm1199, %v1150
        %p1347 = scmp.eq.s32.totalorder %s35, 1
        // Predicated region
        $region81: #{tpu_custom_call.1} parent=55 // pred_check
          %p1348 = pneg %p1347
        $region82: #{tpu_custom_call.1} parent=55 // pred_check_branch
          %1350 = sbr.rel (%p1348) target = $region84
        $region83: #{tpu_custom_call.1} parent=55 // pred_region
          %v1351 = vld [vmem:[#allocation6] sm:$0xff]
          %v1352 = vld [vmem:[#allocation6 + $0x8] sm:$0xff]
          %v1353 = vld [vmem:[#allocation6 + $0x10] sm:$0xff]
          %v1354 = vrcp.pop %v1351
          %v1355 = vrcp.pop %v1352
          %v1356 = vrcp.pop %v1353
          %v1357 = vld [vmem:[#allocation7] sm:$0xff]
          %v1358 = vld [vmem:[#allocation7 + $0x8] sm:$0xff]
          %v1359 = vld [vmem:[#allocation7 + $0x10] sm:$0xff]
          %1361 = vset.pattern.permute.xlu0 0
          %1362 = vperm.xlu0 %1361, %v1354
          %v1363 = vpop.permute.xlu0 %1362
          %1366 = vset.pattern.permute.xlu0 0
          %1367 = vperm.xlu0 %1366, %v1355
          %v1368 = vpop.permute.xlu0 %1367
          %1371 = vset.pattern.permute.xlu0 0
          %1372 = vperm.xlu0 %1371, %v1356
          %v1373 = vpop.permute.xlu0 %1372
          %v1375 = vmul.f32 %v1357, %v1363
          %v1376 = vmul.f32 %v1358, %v1368
          %v1377 = vmul.f32 %v1359, %v1373
          %v1378 = vpack.c.bf16 %v1376, %v1375
          %v1379 = vpack.c.bf16 %v1377, %v1377
          %v1382 = vunpack.c.l.b16 %v1378
          %v1383 = vunpack.c.h.b16 %v1378
          %v1384 = vunpack.c.l.b16 %v1379
          %v1385 = vpack.c.b16 %v1382, %v1382
          %v1386 = vpack.c.b16 %v1383, %v1383
          %v1387 = vpack.c.b16 %v1384, %v1384
          %1391 = vst [vmem:[%s490] sm:$0xf] %v1385
          %1392 = vst [vmem:[%s490 + $0x4] sm:$0xf] %v1386
          %1393 = vst [vmem:[%s490 + $0x8] sm:$0xf] %v1387
        $region84: #{tpu_custom_call.1} parent=55 // pred_fallthru
          _
        %s1394 = sand.u32 %s264, 1
        %s1395 = scalar_lea.sflag [#allocation10], %s1394
        %s1396 = sand.u32 %s264, 1
        %s1397 = smul.addr %s1396, 12
        %s1398 = scalar_lea.vmem [#allocation17], %s1397
        // Predicated region
        $region85: #{tpu_custom_call.1} parent=55 // pred_check
          %p1399 = pneg %p274
        $region86: #{tpu_custom_call.1} parent=55 // pred_check_branch
          %1401 = sbr.rel (%p1399) target = $region88
        $region87: #{tpu_custom_call.1} parent=55 // pred_region
          %s1402 = smul.u32 3, %s34
          %s1404 = ssub.s32 192, 192
          %1405 = vsyncadd %s1395, %s1404
          %s1406 = smul.addr %s1402, 64
          %s1407 = scalar_lea.hbm %s9, %s1406
          %s1408 = sshll.u32 %s1398, 4
          %s1409 = int_to_ptr.vmem [resolvable:$true] %s1408
          %1414 = dma.vmem_to_hbm [thread:$0]  %s1409, 192, %s1407, %s1395, 64, 64, 4
        $region88: #{tpu_custom_call.1} parent=55 // pred_fallthru
          _
      $region56: #{tpu_custom_call.1} parent=5 // pred_fallthru
        _
      %p1415 = scmp.le.s32.totalorder 2, %s25
      // Predicated region
      $region89: #{tpu_custom_call.1} parent=5 // pred_check
        %p1416 = pneg %p1415
      $region90: #{tpu_custom_call.1} parent=5 // pred_check_branch
        %1418 = sbr.rel (%p1416) target = $region92
      $region91: #{tpu_custom_call.1} parent=5 // pred_region
        %s1419 = ssub.s32 %s25, 2
        // Predicated region
        $region93: #{tpu_custom_call.1} parent=91 // pred_check
          %p1420 = pneg %p280
        $region94: #{tpu_custom_call.1} parent=91 // pred_check_branch
          %1422 = sbr.rel (%p1420) target = $region96
        $region95: #{tpu_custom_call.1} parent=91 // pred_region
          %s1423 = sand.u32 %s265, 1
          %s1424 = scalar_lea.sflag [#allocation10], %s1423
          %s1425 = sand.u32 %s265, 1
          %s1426 = smul.addr %s1425, 12
          %s1427 = scalar_lea.vmem [#allocation17], %s1426
          %1428 = dma.done %s1424, 192
        $region96: #{tpu_custom_call.1} parent=91 // pred_fallthru
          _
      $region92: #{tpu_custom_call.1} parent=5 // pred_fallthru
        _
    $region6: #{tpu_custom_call.1} parent=1 // loop_footer
      %s29 = sadd.s32 1, %s25
    $region7: #{tpu_custom_call.1} parent=1 // loop_footer_branch
      %24 = sbr.rel target = $region3
    $region8: #{tpu_custom_call.1} parent=1 // loop_exit
      _
    %1429 = vsyncpa [#allocation9], 1
    %s1430 = scalar_lea.sflag [#allocation9], 1
    %1431 = vsyncpa %s1430, 1
    %1432 = vsyncpa [#allocation12], 1
    %1433 = vsyncpa [#allocation15], 1
    %s1434 = scalar_lea.sflag [#allocation15], 1
    %1435 = vsyncpa %s1434, 1
    %1436 = vsyncpa [#allocation10], 1
    %s1437 = scalar_lea.sflag [#allocation10], 1
    %1438 = vsyncpa %s1437, 1

</llo_original>
